<compile_context>
chip_gen: v7x
topology: tpu7x:2x2x1
jax: 0.10.0
libtpu: 0.0.40
codegen_flags: <defaults>
</compile_context>

<pallas_src>
import functools

import jax
import jax.numpy as jnp
import numpy as np
from jax import lax
from jax.experimental import pallas as pl
from jax.experimental.pallas import tpu as pltpu


# --------------------------------------------------------------------------
# Small helpers: padding / VMEM budgeting / tile selection.
# --------------------------------------------------------------------------
def _round_up(x, m):
    return ((x + m - 1) // m) * m


def _vmem_capacity_bytes():
    try:
        return int(pltpu.get_tpu_info().vmem_capacity_bytes)
    except Exception:
        return 64 * 1024 * 1024  # conservative: v7x per-TensorCore VMEM


def _estimate_vmem_bytes(tile_n, M, Cq, Cc, inner, cq_pad):
    """Generous per-grid-step VMEM footprint estimate (f32 everywhere)."""
    f32 = 4
    # Pipeline blocks (double-buffered by default).
    blocks = 2 * (tile_n * Cq + M * Cc + Cq * inner + 2 * Cc * inner
                  + inner * cq_pad + cq_pad + tile_n * cq_pad)
    # Persistent scratch: q, merged (tile_n x inner) + k, v (M x inner).
    scratch = 2 * tile_n * inner + 2 * M * inner
    # Transient per-head values (sim / p / attn + casts), rounded up.
    trans = 4 * tile_n * max(M, 128) + 2 * tile_n * inner
    return (blocks + scratch + trans) * f32


def _pick_tile_n(N, M, Cq, Cc, inner, cq_pad, vmem_cap):
    """Largest query tile whose estimated footprint fits ~45% of VMEM."""
    n_cap = _round_up(max(N, 1), 8)
    budget = int(vmem_cap * 0.45)
    for cand in (2048, 1024, 512, 256, 128, 64, 32, 16, 8):
        t = min(cand, n_cap)
        if _estimate_vmem_bytes(t, M, Cq, Cc, inner, cq_pad) <= budget:
            return t
    return 8


# --------------------------------------------------------------------------
# Fused kernel: q/k/v projection + per-head attention + output projection.
# One grid point == (batch element, query tile).
# --------------------------------------------------------------------------
def _fused_cross_attn_kernel(x_ref, ctx_ref, wq_ref, wk_ref, wv_ref, wo_ref,
                             bo_ref, o_ref,
                             q_scr, k_scr, v_scr, merged_scr,
                             *, heads, dim_head, matmul_dtype):
    x = x_ref[0]        # (TILE_N, Cq)
    c = ctx_ref[0]      # (M, Cc)
    wq = wq_ref[...]    # (Cq, inner)  -- softmax scale already folded in
    wk = wk_ref[...]    # (Cc, inner)
    wv = wv_ref[...]    # (Cc, inner)

    if matmul_dtype is not None:
        x = x.astype(matmul_dtype)
        c = c.astype(matmul_dtype)
        wq = wq.astype(matmul_dtype)
        wk = wk.astype(matmul_dtype)
        wv = wv.astype(matmul_dtype)

    # Full-width projections (MXU lane dim = inner), stored to VMEM scratch in
    # the compute dtype so every downstream matmul sees the same precision.
    q_scr[...] = jnp.dot(x, wq, preferred_element_type=jnp.float32).astype(q_scr.dtype)
    k_scr[...] = jnp.dot(c, wk, preferred_element_type=jnp.float32).astype(k_scr.dtype)
    v_scr[...] = jnp.dot(c, wv, preferred_element_type=jnp.float32).astype(v_scr.dtype)

    # Per-head attention.  `heads` is a small static int; the loop is unrolled
    # and each head's (TILE_N, d) result is written straight into the merged
    # scratch buffer -> no jnp.concatenate, no H live head outputs.
    for h in range(heads):
        lo = h * dim_head
        hi = lo + dim_head
        qh = q_scr[:, lo:hi]          # (TILE_N, d), compute dtype
        kh = k_scr[:, lo:hi]          # (M, d)
        vh = v_scr[:, lo:hi]          # (M, d)

        # sim[i, j] = sum_d qh[i, d] * kh[j, d]   (scale folded into Wq)
        sim = lax.dot_general(qh, kh, (((1,), (1,)), ((), ())),
                              preferred_element_type=jnp.float32)   # (TILE_N, M)

        # Numerically stable softmax in f32; denominator via EUP reciprocal.
        sim = sim - jnp.max(sim, axis=-1, keepdims=True)
        p = jnp.exp(sim)
        attn = p * pl.reciprocal(jnp.sum(p, axis=-1, keepdims=True), approx=True)

        merged_scr[:, lo:hi] = jnp.dot(
            attn.astype(vh.dtype), vh,
            preferred_element_type=jnp.float32).astype(merged_scr.dtype)

    merged = merged_scr[...]          # (TILE_N, inner), compute dtype
    wo = wo_ref[...]                  # (inner, Cq_pad)
    if matmul_dtype is not None:
        wo = wo.astype(matmul_dtype)

    # Fused output projection.  Cq_pad is a multiple of 128, so this store is
    # a lane-dense, unmasked vst.
    y = jnp.dot(merged, wo, preferred_element_type=jnp.float32) + bo_ref[...]
    o_ref[0] = y.astype(o_ref.dtype)


# --------------------------------------------------------------------------
# One-time parameter preparation (hoisted out of the forward path).
# --------------------------------------------------------------------------
def prepare_params(params, *, dim_head):
    """Fold softmax scale into Wq; pad Wo/bo to a lane-dense output width."""
    scale = float(dim_head) ** -0.5
    wo = params["wo_t"]                         # (inner, Cq)
    inner, cq = wo.shape
    cq_pad = _round_up(cq, 128)
    pad = cq_pad - cq
    return {
        "wq_s": params["wq_t"] * scale,                               # (Cq, inner)
        "wk_t": params["wk_t"],                                       # (Cc, inner)
        "wv_t": params["wv_t"],                                       # (Cc, inner)
        "wo_p": jnp.pad(wo, ((0, 0), (0, pad))),                      # (inner, Cq_pad)
        "bo_p": jnp.pad(params["bo"].reshape(1, cq), ((0, 0), (0, pad))),  # (1, Cq_pad)
    }


# --------------------------------------------------------------------------
# Wrapper
# --------------------------------------------------------------------------
def last_channel_cross_attention(x, context, prepared, *, heads, dim_head,
                                 matmul_dtype=None, tile_n=None):
    """x: (B, N, Cq), context: (B, M, Cc) or None -> (B, N, Cq).

    matmul_dtype=jnp.bfloat16 runs every MXU matmul in bf16 (recommended as
    the default on v5e); softmax math always stays in f32.
    """
    if context is None:
        context = x
    B, N, Cq = x.shape
    _, M, Cc = context.shape
    inner = heads * dim_head
    cq_pad = prepared["wo_p"].shape[1]

    vmem_cap = _vmem_capacity_bytes()
    if tile_n is None:
        tile_n = _pick_tile_n(N, M, Cq, Cc, inner, cq_pad, vmem_cap)

    # Pad the query sequence so TILE_N divides it (padded rows sliced off).
    n_pad = _round_up(N, tile_n)
    if n_pad != N:
        x = jnp.pad(x, ((0, 0), (0, n_pad - N), (0, 0)))
    n_tiles = n_pad // tile_n

    compute_dtype = jnp.float32 if matmul_dtype is None else matmul_dtype

    est = _estimate_vmem_bytes(tile_n, M, Cq, Cc, inner, cq_pad)
    vmem_limit = int(min(vmem_cap * 9 // 10, max(32 * 1024 * 1024, 2 * est)))

    kernel = functools.partial(
        _fused_cross_attn_kernel,
        heads=heads, dim_head=dim_head, matmul_dtype=matmul_dtype)

    attn_fn = pl.pallas_call(
        kernel,
        out_shape=jax.ShapeDtypeStruct((B, n_pad, cq_pad), x.dtype),
        grid_spec=pltpu.PrefetchScalarGridSpec(
            num_scalar_prefetch=0,
            grid=(B, n_tiles),
            in_specs=[
                pl.BlockSpec((1, tile_n, Cq), lambda b, n: (b, n, 0)),   # x tile
                pl.BlockSpec((1, M, Cc),      lambda b, n: (b, 0, 0)),   # context
                pl.BlockSpec((Cq, inner),     lambda b, n: (0, 0)),      # Wq*scale
                pl.BlockSpec((Cc, inner),     lambda b, n: (0, 0)),      # Wk
                pl.BlockSpec((Cc, inner),     lambda b, n: (0, 0)),      # Wv
                pl.BlockSpec((inner, cq_pad), lambda b, n: (0, 0)),      # Wo (padded)
                pl.BlockSpec((1, cq_pad),     lambda b, n: (0, 0)),      # bo (padded)
            ],
            out_specs=pl.BlockSpec((1, tile_n, cq_pad), lambda b, n: (b, n, 0)),
            scratch_shapes=[
                pltpu.VMEM((tile_n, inner), compute_dtype),  # q
                pltpu.VMEM((M, inner), compute_dtype),       # k
                pltpu.VMEM((M, inner), compute_dtype),       # v
                pltpu.VMEM((tile_n, inner), compute_dtype),  # merged head outputs
            ],
        ),
        compiler_params=pltpu.CompilerParams(
            dimension_semantics=("parallel", "parallel"),
            vmem_limit_bytes=vmem_limit,
        ),
    )
    y = attn_fn(x, context, prepared["wq_s"], prepared["wk_t"],
                prepared["wv_t"], prepared["wo_p"], prepared["bo_p"])
    # Drop query-row padding and output-channel padding; Dropout(0.0) == id.
    return y[:, :N, :Cq]


# --------------------------------------------------------------------------
# Pure-JAX reference (mirrors the PyTorch forward exactly)
# --------------------------------------------------------------------------
def _reference(x, context, params, *, heads, dim_head):
    B, N, _ = x.shape
    _, M, _ = context.shape
    H, d = heads, dim_head
    scale = float(d) ** -0.5
    q = x @ params["wq_t"]
    k = context @ params["wk_t"]
    v = context @ params["wv_t"]

    def split(t, L):
        return t.reshape(B, L, H, d).transpose(0, 2, 1, 3)   # (B, H, L, d)

    q, k, v = split(q, N), split(k, M), split(v, M)
    sim = jnp.einsum("bhid,bhjd->bhij", q, k) * scale
    attn = jax.nn.softmax(sim, axis=-1)
    out = jnp.einsum("bhij,bhjd->bhid", attn, v)
    out = out.transpose(0, 2, 1, 3).reshape(B, N, H * d)
    return out @ params["wo_t"] + params["bo"]


# --------------------------------------------------------------------------
if __name__ == "__main__":
    # Small shapes consistent with the module's (B, *, C) contract.
    B, N, M = 2, 16, 8            # batch, query seq, context seq
    query_dim, context_dim = 32, 24
    heads, dim_head = 4, 16
    inner = heads * dim_head

    key = jax.random.PRNGKey(0)
    kx, kc, k1, k2, k3, k4, k5 = jax.random.split(key, 7)

    x = jax.random.normal(kx, (B, N, query_dim), dtype=jnp.float32)
    context = jax.random.normal(kc, (B, M, context_dim), dtype=jnp.float32)

    # Deterministic synthetic parameters (already transposed: y = x @ W_t).
    params = {
        "wq_t": 0.1 * jax.random.normal(k1, (query_dim, inner), jnp.float32),
        "wk_t": 0.1 * jax.random.normal(k2, (context_dim, inner), jnp.float32),
        "wv_t": 0.1 * jax.random.normal(k3, (context_dim, inner), jnp.float32),
        "wo_t": 0.1 * jax.random.normal(k4, (inner, query_dim), jnp.float32),
        "bo":   0.1 * jax.random.normal(k5, (query_dim,), jnp.float32),
    }

    # One-time weight prep (scale fold + lane-dense Wo/bo padding).
    prepared = jax.tree_util.tree_map(jax.block_until_ready,
                                      prepare_params(params, dim_head=dim_head))

    y_ref = _reference(x, context, params, heads=heads, dim_head=dim_head)

    # f32 MXU path (tolerance covers the EUP approx reciprocal).
    y = last_channel_cross_attention(
        x, context, prepared, heads=heads, dim_head=dim_head)
    y = jax.block_until_ready(y)
    np.testing.assert_allclose(np.asarray(y), np.asarray(y_ref),
                               rtol=5e-3, atol=5e-3)

    # bf16 MXU path (softmax stays f32); recommended default on v5e.
    y_bf16 = last_channel_cross_attention(
        x, context, prepared, heads=heads, dim_head=dim_head,
        matmul_dtype=jnp.bfloat16)
    y_bf16 = jax.block_until_ready(y_bf16)
    np.testing.assert_allclose(np.asarray(y_bf16), np.asarray(y_ref),
                               rtol=5e-2, atol=5e-2)

    print("KERNEL_OK")
</pallas_src>

<mosaic_0001>
module attributes {stable_mosaic.version = 11 : i64} {
  func.func @_fused_cross_attn_kernel(%arg0: i32, %arg1: i32, %arg2: memref<1x16x32xf32, #tpu.memory_space<vmem>>, %arg3: memref<1x8x24xf32, #tpu.memory_space<vmem>>, %arg4: memref<32x64xf32, #tpu.memory_space<vmem>>, %arg5: memref<24x64xf32, #tpu.memory_space<vmem>>, %arg6: memref<24x64xf32, #tpu.memory_space<vmem>>, %arg7: memref<64x128xf32, #tpu.memory_space<vmem>>, %arg8: memref<1x128xf32, #tpu.memory_space<vmem>>, %arg9: memref<1x16x128xf32, #tpu.memory_space<vmem>>, %arg10: memref<16x64xf32, #tpu.memory_space<vmem>>, %arg11: memref<8x64xf32, #tpu.memory_space<vmem>>, %arg12: memref<8x64xf32, #tpu.memory_space<vmem>>, %arg13: memref<16x64xf32, #tpu.memory_space<vmem>>) attributes {dimension_semantics = [#tpu.dimension_semantics<parallel>, #tpu.dimension_semantics<parallel>], iteration_bounds = array<i64: 2, 1>, scalar_prefetch = 0 : i64, scratch_operands = 4 : i64, tpu.core_type = #tpu.core_type<tc>, window_params = [{transform_indices = @transform_0, window_bounds = array<i64: 1, 16, 32>}, {transform_indices = @transform_1, window_bounds = array<i64: 1, 8, 24>}, {pipeline_mode = #tpu.pipeline_mode<synchronous>, transform_indices = @transform_2, window_bounds = array<i64: 32, 64>}, {pipeline_mode = #tpu.pipeline_mode<synchronous>, transform_indices = @transform_3, window_bounds = array<i64: 24, 64>}, {pipeline_mode = #tpu.pipeline_mode<synchronous>, transform_indices = @transform_4, window_bounds = array<i64: 24, 64>}, {pipeline_mode = #tpu.pipeline_mode<synchronous>, transform_indices = @transform_5, window_bounds = array<i64: 64, 128>}, {pipeline_mode = #tpu.pipeline_mode<synchronous>, transform_indices = @transform_6, window_bounds = array<i64: 1, 128>}, {transform_indices = @transform_7, window_bounds = array<i64: 1, 16, 128>}]} {
    %c0 = arith.constant 0 : index
    %c0_0 = arith.constant 0 : index
    %c0_1 = arith.constant 0 : index
    %0 = vector.load %arg2[%c0, %c0_0, %c0_1] : memref<1x16x32xf32, #tpu.memory_space<vmem>>, vector<1x16x32xf32>
    %1 = vector.shape_cast %0 : vector<1x16x32xf32> to vector<16x32xf32>
    %c0_2 = arith.constant 0 : index
    %c0_3 = arith.constant 0 : index
    %c0_4 = arith.constant 0 : index
    %2 = vector.load %arg3[%c0_2, %c0_3, %c0_4] : memref<1x8x24xf32, #tpu.memory_space<vmem>>, vector<1x8x24xf32>
    %3 = vector.shape_cast %2 : vector<1x8x24xf32> to vector<8x24xf32>
    %c0_5 = arith.constant 0 : index
    %c0_6 = arith.constant 0 : index
    %4 = vector.load %arg4[%c0_5, %c0_6] : memref<32x64xf32, #tpu.memory_space<vmem>>, vector<32x64xf32>
    %c0_7 = arith.constant 0 : index
    %c0_8 = arith.constant 0 : index
    %5 = vector.load %arg5[%c0_7, %c0_8] : memref<24x64xf32, #tpu.memory_space<vmem>>, vector<24x64xf32>
    %c0_9 = arith.constant 0 : index
    %c0_10 = arith.constant 0 : index
    %6 = vector.load %arg6[%c0_9, %c0_10] : memref<24x64xf32, #tpu.memory_space<vmem>>, vector<24x64xf32>
    %cst = arith.constant dense<0.000000e+00> : vector<16x64xf32>
    %7 = tpu.matmul %1, %4, %cst {dimension_numbers = #tpu.dot_dimension_numbers<[1], [0], [0], [1], [0, 0, 1, 1], [], []>} : vector<16x32xf32>, vector<32x64xf32>, vector<16x64xf32> -> vector<16x64xf32>
    %c0_11 = arith.constant 0 : index
    %c0_12 = arith.constant 0 : index
    %8 = vector.load %arg10[%c0_11, %c0_12] : memref<16x64xf32, #tpu.memory_space<vmem>>, vector<16x64xf32>
    tpu.vector_store %arg10[%c0_11, %c0_12], %7 {strides = array<i32>} : memref<16x64xf32, #tpu.memory_space<vmem>>, vector<16x64xf32>,
    %cst_13 = arith.constant dense<0.000000e+00> : vector<8x64xf32>
    %9 = tpu.matmul %3, %5, %cst_13 {dimension_numbers = #tpu.dot_dimension_numbers<[1], [0], [0], [1], [0, 0, 1, 1], [], []>} : vector<8x24xf32>, vector<24x64xf32>, vector<8x64xf32> -> vector<8x64xf32>
    %c0_14 = arith.constant 0 : index
    %c0_15 = arith.constant 0 : index
    %10 = vector.load %arg11[%c0_14, %c0_15] : memref<8x64xf32, #tpu.memory_space<vmem>>, vector<8x64xf32>
    tpu.vector_store %arg11[%c0_14, %c0_15], %9 {strides = array<i32>} : memref<8x64xf32, #tpu.memory_space<vmem>>, vector<8x64xf32>,
    %cst_16 = arith.constant dense<0.000000e+00> : vector<8x64xf32>
    %11 = tpu.matmul %3, %6, %cst_16 {dimension_numbers = #tpu.dot_dimension_numbers<[1], [0], [0], [1], [0, 0, 1, 1], [], []>} : vector<8x24xf32>, vector<24x64xf32>, vector<8x64xf32> -> vector<8x64xf32>
    %c0_17 = arith.constant 0 : index
    %c0_18 = arith.constant 0 : index
    %12 = vector.load %arg12[%c0_17, %c0_18] : memref<8x64xf32, #tpu.memory_space<vmem>>, vector<8x64xf32>
    tpu.vector_store %arg12[%c0_17, %c0_18], %11 {strides = array<i32>} : memref<8x64xf32, #tpu.memory_space<vmem>>, vector<8x64xf32>,
    %c0_19 = arith.constant 0 : index
    %c0_20 = arith.constant 0 : index
    %13 = vector.load %arg10[%c0_19, %c0_20] : memref<16x64xf32, #tpu.memory_space<vmem>>, vector<16x16xf32>
    %c0_21 = arith.constant 0 : index
    %c0_22 = arith.constant 0 : index
    %14 = vector.load %arg11[%c0_21, %c0_22] : memref<8x64xf32, #tpu.memory_space<vmem>>, vector<8x16xf32>
    %c0_23 = arith.constant 0 : index
    %c0_24 = arith.constant 0 : index
    %15 = vector.load %arg12[%c0_23, %c0_24] : memref<8x64xf32, #tpu.memory_space<vmem>>, vector<8x16xf32>
    %cst_25 = arith.constant dense<0.000000e+00> : vector<16x8xf32>
    %16 = tpu.matmul %13, %14, %cst_25 {dimension_numbers = #tpu.dot_dimension_numbers<[1], [1], [0], [0], [0, 0, 1, 0], [], []>} : vector<16x16xf32>, vector<8x16xf32>, vector<16x8xf32> -> vector<16x8xf32>
    %cst_26 = arith.constant dense<0xFF800000> : vector<16xf32>
    %17 = vector.multi_reduction <maximumf>, %16, %cst_26 [1] : vector<16x8xf32> to vector<16xf32>
    %18 = vector.shape_cast %17 : vector<16xf32> to vector<16x1xf32>
    %19 = vector.broadcast %18 : vector<16x1xf32> to vector<16x8xf32>
    %20 = arith.subf %16, %19 : vector<16x8xf32>
    %21 = math.exp %20 : vector<16x8xf32>
    %cst_27 = arith.constant dense<0.000000e+00> : vector<16xf32>
    %22 = vector.multi_reduction <add>, %21, %cst_27 [1] : vector<16x8xf32> to vector<16xf32>
    %23 = vector.shape_cast %22 : vector<16xf32> to vector<16x1xf32>
    %24 = tpu.reciprocal %23 {approx = true} : vector<16x1xf32> -> vector<16x1xf32>
    %25 = vector.broadcast %24 : vector<16x1xf32> to vector<16x8xf32>
    %26 = arith.mulf %21, %25 : vector<16x8xf32>
    %cst_28 = arith.constant dense<0.000000e+00> : vector<16x16xf32>
    %27 = tpu.matmul %26, %15, %cst_28 {dimension_numbers = #tpu.dot_dimension_numbers<[1], [0], [0], [1], [0, 0, 1, 1], [], []>} : vector<16x8xf32>, vector<8x16xf32>, vector<16x16xf32> -> vector<16x16xf32>
    %c0_29 = arith.constant 0 : index
    %c0_30 = arith.constant 0 : index
    %28 = vector.load %arg13[%c0_29, %c0_30] : memref<16x64xf32, #tpu.memory_space<vmem>>, vector<16x16xf32>
    tpu.vector_store %arg13[%c0_29, %c0_30], %27 {strides = array<i32>} : memref<16x64xf32, #tpu.memory_space<vmem>>, vector<16x16xf32>,
    %c0_31 = arith.constant 0 : index
    %c16 = arith.constant 16 : index
    %29 = vector.load %arg10[%c0_31, %c16] : memref<16x64xf32, #tpu.memory_space<vmem>>, vector<16x16xf32>
    %c0_32 = arith.constant 0 : index
    %c16_33 = arith.constant 16 : index
    %30 = vector.load %arg11[%c0_32, %c16_33] : memref<8x64xf32, #tpu.memory_space<vmem>>, vector<8x16xf32>
    %c0_34 = arith.constant 0 : index
    %c16_35 = arith.constant 16 : index
    %31 = vector.load %arg12[%c0_34, %c16_35] : memref<8x64xf32, #tpu.memory_space<vmem>>, vector<8x16xf32>
    %cst_36 = arith.constant dense<0.000000e+00> : vector<16x8xf32>
    %32 = tpu.matmul %29, %30, %cst_36 {dimension_numbers = #tpu.dot_dimension_numbers<[1], [1], [0], [0], [0, 0, 1, 0], [], []>} : vector<16x16xf32>, vector<8x16xf32>, vector<16x8xf32> -> vector<16x8xf32>
    %cst_37 = arith.constant dense<0xFF800000> : vector<16xf32>
    %33 = vector.multi_reduction <maximumf>, %32, %cst_37 [1] : vector<16x8xf32> to vector<16xf32>
    %34 = vector.shape_cast %33 : vector<16xf32> to vector<16x1xf32>
    %35 = vector.broadcast %34 : vector<16x1xf32> to vector<16x8xf32>
    %36 = arith.subf %32, %35 : vector<16x8xf32>
    %37 = math.exp %36 : vector<16x8xf32>
    %cst_38 = arith.constant dense<0.000000e+00> : vector<16xf32>
    %38 = vector.multi_reduction <add>, %37, %cst_38 [1] : vector<16x8xf32> to vector<16xf32>
    %39 = vector.shape_cast %38 : vector<16xf32> to vector<16x1xf32>
    %40 = tpu.reciprocal %39 {approx = true} : vector<16x1xf32> -> vector<16x1xf32>
    %41 = vector.broadcast %40 : vector<16x1xf32> to vector<16x8xf32>
    %42 = arith.mulf %37, %41 : vector<16x8xf32>
    %cst_39 = arith.constant dense<0.000000e+00> : vector<16x16xf32>
    %43 = tpu.matmul %42, %31, %cst_39 {dimension_numbers = #tpu.dot_dimension_numbers<[1], [0], [0], [1], [0, 0, 1, 1], [], []>} : vector<16x8xf32>, vector<8x16xf32>, vector<16x16xf32> -> vector<16x16xf32>
    %c0_40 = arith.constant 0 : index
    %c16_41 = arith.constant 16 : index
    %44 = vector.load %arg13[%c0_40, %c16_41] : memref<16x64xf32, #tpu.memory_space<vmem>>, vector<16x16xf32>
    tpu.vector_store %arg13[%c0_40, %c16_41], %43 {strides = array<i32>} : memref<16x64xf32, #tpu.memory_space<vmem>>, vector<16x16xf32>,
    %c0_42 = arith.constant 0 : index
    %c32 = arith.constant 32 : index
    %45 = vector.load %arg10[%c0_42, %c32] : memref<16x64xf32, #tpu.memory_space<vmem>>, vector<16x16xf32>
    %c0_43 = arith.constant 0 : index
    %c32_44 = arith.constant 32 : index
    %46 = vector.load %arg11[%c0_43, %c32_44] : memref<8x64xf32, #tpu.memory_space<vmem>>, vector<8x16xf32>
    %c0_45 = arith.constant 0 : index
    %c32_46 = arith.constant 32 : index
    %47 = vector.load %arg12[%c0_45, %c32_46] : memref<8x64xf32, #tpu.memory_space<vmem>>, vector<8x16xf32>
    %cst_47 = arith.constant dense<0.000000e+00> : vector<16x8xf32>
    %48 = tpu.matmul %45, %46, %cst_47 {dimension_numbers = #tpu.dot_dimension_numbers<[1], [1], [0], [0], [0, 0, 1, 0], [], []>} : vector<16x16xf32>, vector<8x16xf32>, vector<16x8xf32> -> vector<16x8xf32>
    %cst_48 = arith.constant dense<0xFF800000> : vector<16xf32>
    %49 = vector.multi_reduction <maximumf>, %48, %cst_48 [1] : vector<16x8xf32> to vector<16xf32>
    %50 = vector.shape_cast %49 : vector<16xf32> to vector<16x1xf32>
    %51 = vector.broadcast %50 : vector<16x1xf32> to vector<16x8xf32>
    %52 = arith.subf %48, %51 : vector<16x8xf32>
    %53 = math.exp %52 : vector<16x8xf32>
    %cst_49 = arith.constant dense<0.000000e+00> : vector<16xf32>
    %54 = vector.multi_reduction <add>, %53, %cst_49 [1] : vector<16x8xf32> to vector<16xf32>
    %55 = vector.shape_cast %54 : vector<16xf32> to vector<16x1xf32>
    %56 = tpu.reciprocal %55 {approx = true} : vector<16x1xf32> -> vector<16x1xf32>
    %57 = vector.broadcast %56 : vector<16x1xf32> to vector<16x8xf32>
    %58 = arith.mulf %53, %57 : vector<16x8xf32>
    %cst_50 = arith.constant dense<0.000000e+00> : vector<16x16xf32>
    %59 = tpu.matmul %58, %47, %cst_50 {dimension_numbers = #tpu.dot_dimension_numbers<[1], [0], [0], [1], [0, 0, 1, 1], [], []>} : vector<16x8xf32>, vector<8x16xf32>, vector<16x16xf32> -> vector<16x16xf32>
    %c0_51 = arith.constant 0 : index
    %c32_52 = arith.constant 32 : index
    %60 = vector.load %arg13[%c0_51, %c32_52] : memref<16x64xf32, #tpu.memory_space<vmem>>, vector<16x16xf32>
    tpu.vector_store %arg13[%c0_51, %c32_52], %59 {strides = array<i32>} : memref<16x64xf32, #tpu.memory_space<vmem>>, vector<16x16xf32>,
    %c0_53 = arith.constant 0 : index
    %c48 = arith.constant 48 : index
    %61 = vector.load %arg10[%c0_53, %c48] : memref<16x64xf32, #tpu.memory_space<vmem>>, vector<16x16xf32>
    %c0_54 = arith.constant 0 : index
    %c48_55 = arith.constant 48 : index
    %62 = vector.load %arg11[%c0_54, %c48_55] : memref<8x64xf32, #tpu.memory_space<vmem>>, vector<8x16xf32>
    %c0_56 = arith.constant 0 : index
    %c48_57 = arith.constant 48 : index
    %63 = vector.load %arg12[%c0_56, %c48_57] : memref<8x64xf32, #tpu.memory_space<vmem>>, vector<8x16xf32>
    %cst_58 = arith.constant dense<0.000000e+00> : vector<16x8xf32>
    %64 = tpu.matmul %61, %62, %cst_58 {dimension_numbers = #tpu.dot_dimension_numbers<[1], [1], [0], [0], [0, 0, 1, 0], [], []>} : vector<16x16xf32>, vector<8x16xf32>, vector<16x8xf32> -> vector<16x8xf32>
    %cst_59 = arith.constant dense<0xFF800000> : vector<16xf32>
    %65 = vector.multi_reduction <maximumf>, %64, %cst_59 [1] : vector<16x8xf32> to vector<16xf32>
    %66 = vector.shape_cast %65 : vector<16xf32> to vector<16x1xf32>
    %67 = vector.broadcast %66 : vector<16x1xf32> to vector<16x8xf32>
    %68 = arith.subf %64, %67 : vector<16x8xf32>
    %69 = math.exp %68 : vector<16x8xf32>
    %cst_60 = arith.constant dense<0.000000e+00> : vector<16xf32>
    %70 = vector.multi_reduction <add>, %69, %cst_60 [1] : vector<16x8xf32> to vector<16xf32>
    %71 = vector.shape_cast %70 : vector<16xf32> to vector<16x1xf32>
    %72 = tpu.reciprocal %71 {approx = true} : vector<16x1xf32> -> vector<16x1xf32>
    %73 = vector.broadcast %72 : vector<16x1xf32> to vector<16x8xf32>
    %74 = arith.mulf %69, %73 : vector<16x8xf32>
    %cst_61 = arith.constant dense<0.000000e+00> : vector<16x16xf32>
    %75 = tpu.matmul %74, %63, %cst_61 {dimension_numbers = #tpu.dot_dimension_numbers<[1], [0], [0], [1], [0, 0, 1, 1], [], []>} : vector<16x8xf32>, vector<8x16xf32>, vector<16x16xf32> -> vector<16x16xf32>
    %c0_62 = arith.constant 0 : index
    %c48_63 = arith.constant 48 : index
    %76 = vector.load %arg13[%c0_62, %c48_63] : memref<16x64xf32, #tpu.memory_space<vmem>>, vector<16x16xf32>
    tpu.vector_store %arg13[%c0_62, %c48_63], %75 {strides = array<i32>} : memref<16x64xf32, #tpu.memory_space<vmem>>, vector<16x16xf32>,
    %c0_64 = arith.constant 0 : index
    %c0_65 = arith.constant 0 : index
    %77 = vector.load %arg13[%c0_64, %c0_65] : memref<16x64xf32, #tpu.memory_space<vmem>>, vector<16x64xf32>
    %c0_66 = arith.constant 0 : index
    %c0_67 = arith.constant 0 : index
    %78 = vector.load %arg7[%c0_66, %c0_67] : memref<64x128xf32, #tpu.memory_space<vmem>>, vector<64x128xf32>
    %cst_68 = arith.constant dense<0.000000e+00> : vector<16x128xf32>
    %79 = tpu.matmul %77, %78, %cst_68 {dimension_numbers = #tpu.dot_dimension_numbers<[1], [0], [0], [1], [0, 0, 1, 1], [], []>} : vector<16x64xf32>, vector<64x128xf32>, vector<16x128xf32> -> vector<16x128xf32>
    %c0_69 = arith.constant 0 : index
    %c0_70 = arith.constant 0 : index
    %80 = vector.load %arg8[%c0_69, %c0_70] : memref<1x128xf32, #tpu.memory_space<vmem>>, vector<1x128xf32>
    %81 = vector.broadcast %80 : vector<1x128xf32> to vector<16x128xf32>
    %82 = arith.addf %79, %81 : vector<16x128xf32>
    %c0_71 = arith.constant 0 : index
    %c0_72 = arith.constant 0 : index
    %c0_73 = arith.constant 0 : index
    %83 = vector.load %arg9[%c0_71, %c0_72, %c0_73] : memref<1x16x128xf32, #tpu.memory_space<vmem>>, vector<1x16x128xf32>
    %84 = vector.shape_cast %83 : vector<1x16x128xf32> to vector<16x128xf32>
    %85 = vector.shape_cast %82 : vector<16x128xf32> to vector<1x16x128xf32>
    tpu.vector_store %arg9[%c0_71, %c0_72, %c0_73], %85 {strides = array<i32>} : memref<1x16x128xf32, #tpu.memory_space<vmem>>, vector<1x16x128xf32>,
    return
  }
  func.func @transform_0(%arg0: i32, %arg1: i32) -> (i32, i32, i32) {
    %c0_i32 = arith.constant 0 : i32
    %c0_i32_0 = arith.constant 0 : i32
    return %arg0, %arg1, %c0_i32 : i32, i32, i32
  }
  func.func @transform_1(%arg0: i32, %arg1: i32) -> (i32, i32, i32) {
    %c0_i32 = arith.constant 0 : i32
    %c0_i32_0 = arith.constant 0 : i32
    %c0_i32_1 = arith.constant 0 : i32
    return %arg0, %c0_i32, %c0_i32_0 : i32, i32, i32
  }
  func.func @transform_2(%arg0: i32, %arg1: i32) -> (i32, i32) {
    %c0_i32 = arith.constant 0 : i32
    %c0_i32_0 = arith.constant 0 : i32
    %c0_i32_1 = arith.constant 0 : i32
    return %c0_i32, %c0_i32_0 : i32, i32
  }
  func.func @transform_3(%arg0: i32, %arg1: i32) -> (i32, i32) {
    %c0_i32 = arith.constant 0 : i32
    %c0_i32_0 = arith.constant 0 : i32
    %c0_i32_1 = arith.constant 0 : i32
    return %c0_i32, %c0_i32_0 : i32, i32
  }
  func.func @transform_4(%arg0: i32, %arg1: i32) -> (i32, i32) {
    %c0_i32 = arith.constant 0 : i32
    %c0_i32_0 = arith.constant 0 : i32
    %c0_i32_1 = arith.constant 0 : i32
    return %c0_i32, %c0_i32_0 : i32, i32
  }
  func.func @transform_5(%arg0: i32, %arg1: i32) -> (i32, i32) {
    %c0_i32 = arith.constant 0 : i32
    %c0_i32_0 = arith.constant 0 : i32
    %c0_i32_1 = arith.constant 0 : i32
    return %c0_i32, %c0_i32_0 : i32, i32
  }
  func.func @transform_6(%arg0: i32, %arg1: i32) -> (i32, i32) {
    %c0_i32 = arith.constant 0 : i32
    %c0_i32_0 = arith.constant 0 : i32
    %c0_i32_1 = arith.constant 0 : i32
    return %c0_i32, %c0_i32_0 : i32, i32
  }
  func.func @transform_7(%arg0: i32, %arg1: i32) -> (i32, i32, i32) {
    %c0_i32 = arith.constant 0 : i32
    %c0_i32_0 = arith.constant 0 : i32
    return %arg0, %arg1, %c0_i32 : i32, i32, i32
  }
}

</mosaic_0001>

<llo_original>
// kernel: tpu_custom_call.1
$region0: #{tpu_custom_call.1}
  #allocation0 [shape = 'u32[]', space=smem, size = 0x4, offset = 0x4, fixed_abs, tag = 'smem constant byte address 0x4 - core index']
  #allocation1 [shape = 'u32[144,128]{1,0:T(1,128)}', space=vmem, size = 0x12000, scoped, tag = 'internal scratch']
  #allocation2 [shape = 'f32[16,64]{1,0:T(8,128)}', space=vmem, size = 0x2000, scoped, tag = 'scratch operand']
  #allocation3 [shape = 'f32[8,64]{1,0:T(8,128)}', space=vmem, size = 0x1000, scoped, tag = 'scratch operand']
  #allocation4 [shape = 'f32[8,64]{1,0:T(8,128)}', space=vmem, size = 0x1000, scoped, tag = 'scratch operand']
  #allocation5 [shape = 'f32[16,64]{1,0:T(8,128)}', space=vmem, size = 0x2000, scoped, tag = 'scratch operand']
  %s0 = inlined_call_operand.hbm [shape: f32[2,16,32], index: 0, kind: input, shape index: {}]
  %s1 = inlined_call_operand.hbm [shape: f32[2,8,24], index: 1, kind: input, shape index: {}]
  %s2 = inlined_call_operand.hbm [shape: f32[32,64], index: 2, kind: input, shape index: {}]
  %s3 = inlined_call_operand.hbm [shape: f32[24,64], index: 3, kind: input, shape index: {}]
  %s4 = inlined_call_operand.hbm [shape: f32[24,64], index: 4, kind: input, shape index: {}]
  %s5 = inlined_call_operand.hbm [shape: f32[64,128], index: 5, kind: input, shape index: {}]
  %s6 = inlined_call_operand.vmem [shape: f32[1,128], index: 6, kind: input, shape index: {}]
  %s7 = inlined_call_operand.hbm [shape: f32[2,16,128], index: 7, kind: output, shape index: {}]
  %s8 = sld [smem:[#allocation0]]
  $region85: #{tpu_custom_call.1} parent=0
    _
  %s10 = ssub.s32 1, %s8
  %s11 = scalar_select 0, %s10, %s8
  $region1: #{tpu_custom_call.1} parent=0
    #allocation6 [shape = 'u8[16384]{0}', space=vmem, size = 0x4000, scoped, tag = 'input window, operand 0']
    #allocation7 [shape = 's32[2]{0}', space=sflag, size = 0x8, scoped, tag = 'scoped memory for tpu_custom_call.1']
    #allocation8 [shape = 's32[2]{0}', space=sflag, size = 0x8, scoped, tag = 'scoped memory for tpu_custom_call.1']
    #allocation9 [shape = 'u8[8192]{0}', space=vmem, size = 0x2000, scoped, tag = 'input window, operand 1']
    #allocation10 [shape = 's32[2]{0}', space=sflag, size = 0x8, scoped, tag = 'scoped memory for tpu_custom_call.1']
    #allocation11 [shape = 'u8[16384]{0}', space=vmem, size = 0x4000, scoped, tag = 'input window, operand 2, single buffered']
    #allocation12 [shape = 'u8[12288]{0}', space=vmem, size = 0x3000, scoped, tag = 'input window, operand 3, single buffered']
    #allocation13 [shape = 's32[1]{0}', space=sflag, size = 0x4, scoped, tag = 'scoped memory for tpu_custom_call.1']
    #allocation14 [shape = 'u8[12288]{0}', space=vmem, size = 0x3000, scoped, tag = 'input window, operand 4, single buffered']
    #allocation15 [shape = 'u8[32768]{0}', space=vmem, size = 0x8000, scoped, tag = 'input window, operand 5, single buffered']
    #allocation16 [shape = 's32[1]{0}', space=sflag, size = 0x4, scoped, tag = 'scoped memory for tpu_custom_call.1']
    #allocation17 [shape = 'u8[16384]{0}', space=vmem, size = 0x4000, scoped, tag = 'output window, operand 0']
    %12 = vsyncpa [#allocation7], 0
    %s13 = scalar_lea.sflag [#allocation7], 1
    %14 = vsyncpa %s13, 0
    %15 = vsyncpa [#allocation10], 0
    %s16 = scalar_lea.sflag [#allocation10], 1
    %17 = vsyncpa %s16, 0
    %18 = vsyncpa [#allocation13], 0
    %19 = vsyncpa [#allocation16], 0
    %20 = vsyncpa [#allocation8], 0
    %s21 = scalar_lea.sflag [#allocation8], 1
    %22 = vsyncpa %s21, 0
    loop: start=0, step=1, limit=4
    $region2: #{tpu_custom_call.1} parent=1 // loop_pre_header
      _
    $region3: #{tpu_custom_call.1} parent=1 // loop_header
      %s24 = sphi 0, %s28
      %p25 = scmp.ge.s32.totalorder %s24, 4
      %s31 = sphi 0, %s43
      %s32 = sphi 0, %s39
      %s33 = sphi 0, %s31
      %s34 = sphi 0, %s32
      %s35 = sphi 0, %s33
      %s36 = sphi 0, %s34
      %s48 = sphi 0, %s50
      %s51 = sphi 0, %s48
      %s52 = sphi 0, %s51
      %s68 = sphi 0, %s52
      %s74 = sphi 0, %s76
      %s77 = sphi 0, %s74
      %s78 = sphi 0, %s77
      %s94 = sphi 0, %s78
      %s98 = sphi 0, %s98
      %s100 = sphi 0, %s98
      %s101 = sphi 0, %s100
      %s115 = sphi 0, %s101
      %s119 = sphi 0, %s119
      %s121 = sphi 0, %s119
      %s122 = sphi 0, %s121
      %s136 = sphi 0, %s122
      %s140 = sphi 0, %s140
      %s142 = sphi 0, %s140
      %s143 = sphi 0, %s142
      %s157 = sphi 0, %s143
      %s161 = sphi 0, %s161
      %s163 = sphi 0, %s161
      %s164 = sphi 0, %s163
      %s178 = sphi 0, %s164
      %s182 = sphi 0, %s182
      %s184 = sphi 0, %s182
      %s185 = sphi 0, %s184
      %s199 = sphi 0, %s185
      %s207 = sphi 0, %s209
      %s210 = sphi 0, %s207
      %s211 = sphi 0, %s210
      %s227 = sphi 0, %s211
    $region4: #{tpu_custom_call.1} parent=1 // loop_header_branch
      %27 = sbr.rel (%p25) target = $region8
    $region5: #{tpu_custom_call.1} parent=1 // loop_body
      %s29 = ssub.s32 %s24, 1
      %s30 = ssub.s32 %s24, 2
      %s37 = sadd.s32 1, %s32
      %p38 = scmp.ge.s32.totalorder %s37, 1
      %s39 = scalar_select %p38, 0, %s37
      %s40 = sadd.s32 1, %s31
      %s41 = scalar_select %p38, %s40, %s31
      %p42 = scmp.ge.s32.totalorder %s41, 2
      %s43 = scalar_select %p42, 0, %s41
      %s44 = ssub.s32 %s31, %s43
      %s45 = ssub.s32 %s32, %s39
      %s46 = sor.u32 %s44, %s45
      %p47 = scmp.eq.s32.totalorder %s46, 0
      %s49 = sadd.s32 %s48, 1
      %s50 = scalar_select %p47, %s48, %s49
      %p53 = pneg %p47
      %p54 = scmp.eq.s32.totalorder %s24, 1
      %p55 = por %p53, %p54
      %p56 = scmp.ne.s32.totalorder %s48, %s51
      %p57 = scmp.eq.s32.totalorder %s24, 0
      %p58 = por %p56, %p57
      %p59 = scmp.ne.s32.totalorder %s48, %s51
      %p60 = scmp.eq.s32.totalorder %s29, 1
      %p61 = por %p59, %p60
      %p62 = scmp.ne.s32.totalorder %s51, %s52
      %p63 = scmp.eq.s32.totalorder %s29, 0
      %p64 = por %p62, %p63
      %p65 = scmp.ne.s32.totalorder %s51, %s52
      %p66 = scmp.eq.s32.totalorder %s30, 1
      %p67 = por %p65, %p66
      %p69 = scmp.ne.s32.totalorder %s52, %s68
      %p70 = scmp.eq.s32.totalorder %s30, 0
      %p71 = por %p69, %p70
      %s72 = ssub.s32 %s31, %s43
      %p73 = scmp.eq.s32.totalorder %s72, 0
      %s75 = sadd.s32 %s74, 1
      %s76 = scalar_select %p73, %s74, %s75
      %p79 = pneg %p73
      %p80 = scmp.eq.s32.totalorder %s24, 1
      %p81 = por %p79, %p80
      %p82 = scmp.ne.s32.totalorder %s74, %s77
      %p83 = scmp.eq.s32.totalorder %s24, 0
      %p84 = por %p82, %p83
      %p85 = scmp.ne.s32.totalorder %s74, %s77
      %p86 = scmp.eq.s32.totalorder %s29, 1
      %p87 = por %p85, %p86
      %p88 = scmp.ne.s32.totalorder %s77, %s78
      %p89 = scmp.eq.s32.totalorder %s29, 0
      %p90 = por %p88, %p89
      %p91 = scmp.ne.s32.totalorder %s77, %s78
      %p92 = scmp.eq.s32.totalorder %s30, 1
      %p93 = por %p91, %p92
      %p95 = scmp.ne.s32.totalorder %s78, %s94
      %p96 = scmp.eq.s32.totalorder %s30, 0
      %p97 = por %p95, %p96
      %s99 = sadd.s32 %s98, 1
      %p102 = scmp.eq.s32.totalorder %s24, 1
      %p103 = scmp.ne.s32.totalorder %s98, %s100
      %p104 = scmp.eq.s32.totalorder %s24, 0
      %p105 = por %p103, %p104
      %p106 = scmp.ne.s32.totalorder %s98, %s100
      %p107 = scmp.eq.s32.totalorder %s29, 1
      %p108 = por %p106, %p107
      %p109 = scmp.ne.s32.totalorder %s100, %s101
      %p110 = scmp.eq.s32.totalorder %s29, 0
      %p111 = por %p109, %p110
      %p112 = scmp.ne.s32.totalorder %s100, %s101
      %p113 = scmp.eq.s32.totalorder %s30, 1
      %p114 = por %p112, %p113
      %p116 = scmp.ne.s32.totalorder %s101, %s115
      %p117 = scmp.eq.s32.totalorder %s30, 0
      %p118 = por %p116, %p117
      %s120 = sadd.s32 %s119, 1
      %p123 = scmp.eq.s32.totalorder %s24, 1
      %p124 = scmp.ne.s32.totalorder %s119, %s121
      %p125 = scmp.eq.s32.totalorder %s24, 0
      %p126 = por %p124, %p125
      %p127 = scmp.ne.s32.totalorder %s119, %s121
      %p128 = scmp.eq.s32.totalorder %s29, 1
      %p129 = por %p127, %p128
      %p130 = scmp.ne.s32.totalorder %s121, %s122
      %p131 = scmp.eq.s32.totalorder %s29, 0
      %p132 = por %p130, %p131
      %p133 = scmp.ne.s32.totalorder %s121, %s122
      %p134 = scmp.eq.s32.totalorder %s30, 1
      %p135 = por %p133, %p134
      %p137 = scmp.ne.s32.totalorder %s122, %s136
      %p138 = scmp.eq.s32.totalorder %s30, 0
      %p139 = por %p137, %p138
      %s141 = sadd.s32 %s140, 1
      %p144 = scmp.eq.s32.totalorder %s24, 1
      %p145 = scmp.ne.s32.totalorder %s140, %s142
      %p146 = scmp.eq.s32.totalorder %s24, 0
      %p147 = por %p145, %p146
      %p148 = scmp.ne.s32.totalorder %s140, %s142
      %p149 = scmp.eq.s32.totalorder %s29, 1
      %p150 = por %p148, %p149
      %p151 = scmp.ne.s32.totalorder %s142, %s143
      %p152 = scmp.eq.s32.totalorder %s29, 0
      %p153 = por %p151, %p152
      %p154 = scmp.ne.s32.totalorder %s142, %s143
      %p155 = scmp.eq.s32.totalorder %s30, 1
      %p156 = por %p154, %p155
      %p158 = scmp.ne.s32.totalorder %s143, %s157
      %p159 = scmp.eq.s32.totalorder %s30, 0
      %p160 = por %p158, %p159
      %s162 = sadd.s32 %s161, 1
      %p165 = scmp.eq.s32.totalorder %s24, 1
      %p166 = scmp.ne.s32.totalorder %s161, %s163
      %p167 = scmp.eq.s32.totalorder %s24, 0
      %p168 = por %p166, %p167
      %p169 = scmp.ne.s32.totalorder %s161, %s163
      %p170 = scmp.eq.s32.totalorder %s29, 1
      %p171 = por %p169, %p170
      %p172 = scmp.ne.s32.totalorder %s163, %s164
      %p173 = scmp.eq.s32.totalorder %s29, 0
      %p174 = por %p172, %p173
      %p175 = scmp.ne.s32.totalorder %s163, %s164
      %p176 = scmp.eq.s32.totalorder %s30, 1
      %p177 = por %p175, %p176
      %p179 = scmp.ne.s32.totalorder %s164, %s178
      %p180 = scmp.eq.s32.totalorder %s30, 0
      %p181 = por %p179, %p180
      %s183 = sadd.s32 %s182, 1
      %p186 = scmp.eq.s32.totalorder %s24, 1
      %p187 = scmp.ne.s32.totalorder %s182, %s184
      %p188 = scmp.eq.s32.totalorder %s24, 0
      %p189 = por %p187, %p188
      %p190 = scmp.ne.s32.totalorder %s182, %s184
      %p191 = scmp.eq.s32.totalorder %s29, 1
      %p192 = por %p190, %p191
      %p193 = scmp.ne.s32.totalorder %s184, %s185
      %p194 = scmp.eq.s32.totalorder %s29, 0
      %p195 = por %p193, %p194
      %p196 = scmp.ne.s32.totalorder %s184, %s185
      %p197 = scmp.eq.s32.totalorder %s30, 1
      %p198 = por %p196, %p197
      %p200 = scmp.ne.s32.totalorder %s185, %s199
      %p201 = scmp.eq.s32.totalorder %s30, 0
      %p202 = por %p200, %p201
      %s203 = ssub.s32 %s31, %s43
      %s204 = ssub.s32 %s32, %s39
      %s205 = sor.u32 %s203, %s204
      %p206 = scmp.eq.s32.totalorder %s205, 0
      %s208 = sadd.s32 %s207, 1
      %s209 = scalar_select %p206, %s207, %s208
      %p212 = pneg %p206
      %p213 = scmp.eq.s32.totalorder %s24, 1
      %p214 = por %p212, %p213
      %p215 = scmp.ne.s32.totalorder %s207, %s210
      %p216 = scmp.eq.s32.totalorder %s24, 0
      %p217 = por %p215, %p216
      %p218 = scmp.ne.s32.totalorder %s207, %s210
      %p219 = scmp.eq.s32.totalorder %s29, 1
      %p220 = por %p218, %p219
      %p221 = scmp.ne.s32.totalorder %s210, %s211
      %p222 = scmp.eq.s32.totalorder %s29, 0
      %p223 = por %p221, %p222
      %p224 = scmp.ne.s32.totalorder %s210, %s211
      %p225 = scmp.eq.s32.totalorder %s30, 1
      %p226 = por %p224, %p225
      %p228 = scmp.ne.s32.totalorder %s211, %s227
      %p229 = scmp.eq.s32.totalorder %s30, 0
      %p230 = por %p228, %p229
      %p231 = scmp.le.s32.totalorder 1, %s24
      %p232 = scmp.lt.s32.totalorder %s24, 3
      %p233 = pnand %p231, %p232
      %p234 = pneg %p233
      // Predicated region
      $region9: #{tpu_custom_call.1} parent=5 // pred_check
        _
      $region10: #{tpu_custom_call.1} parent=5 // pred_check_branch
        %236 = sbr.rel (%p233) target = $region12
      $region11: #{tpu_custom_call.1} parent=5 // pred_region
        %s237 = ssub.s32 %s24, 1
        // Predicated region
        $region13: #{tpu_custom_call.1} parent=11 // pred_check
          %p238 = pneg %p111
        $region14: #{tpu_custom_call.1} parent=11 // pred_check_branch
          %240 = sbr.rel (%p238) target = $region16
        $region15: #{tpu_custom_call.1} parent=11 // pred_region
          %s242 = ssub.s32 512, 512
          %243 = vsyncadd [#allocation10], %s242
          %s244 = sshll.u32 [#allocation11], 4
          %s245 = int_to_ptr.vmem [resolvable:$true] %s244
          %250 = dma.hbm_to_vmem [thread:$0]  %s2, 512, %s245, [#allocation10], 128, 128, 8
        $region16: #{tpu_custom_call.1} parent=11 // pred_fallthru
          _
        // Predicated region
        $region17: #{tpu_custom_call.1} parent=11 // pred_check
          %p251 = pneg %p132
        $region18: #{tpu_custom_call.1} parent=11 // pred_check_branch
          %253 = sbr.rel (%p251) target = $region20
        $region19: #{tpu_custom_call.1} parent=11 // pred_region
          %s255 = ssub.s32 384, 384
          %256 = vsyncadd [#allocation13], %s255
          %s257 = sshll.u32 [#allocation12], 4
          %s258 = int_to_ptr.vmem [resolvable:$true] %s257
          %263 = dma.hbm_to_vmem [thread:$0]  %s3, 384, %s258, [#allocation13], 128, 128, 8
        $region20: #{tpu_custom_call.1} parent=11 // pred_fallthru
          _
        // Predicated region
        $region21: #{tpu_custom_call.1} parent=11 // pred_check
          %p264 = pneg %p153
        $region22: #{tpu_custom_call.1} parent=11 // pred_check_branch
          %266 = sbr.rel (%p264) target = $region24
        $region23: #{tpu_custom_call.1} parent=11 // pred_region
          %s268 = ssub.s32 384, 384
          %269 = vsyncadd [#allocation13], %s268
          %s270 = sshll.u32 [#allocation14], 4
          %s271 = int_to_ptr.vmem [resolvable:$true] %s270
          %276 = dma.hbm_to_vmem [thread:$0]  %s4, 384, %s271, [#allocation13], 128, 128, 8
        $region24: #{tpu_custom_call.1} parent=11 // pred_fallthru
          _
        // Predicated region
        $region25: #{tpu_custom_call.1} parent=11 // pred_check
          %p277 = pneg %p174
        $region26: #{tpu_custom_call.1} parent=11 // pred_check_branch
          %279 = sbr.rel (%p277) target = $region28
        $region27: #{tpu_custom_call.1} parent=11 // pred_region
          %s281 = ssub.s32 1024, 1024
          %282 = vsyncadd [#allocation16], %s281
          %s283 = sshll.u32 [#allocation15], 4
          %s284 = int_to_ptr.vmem [resolvable:$true] %s283
          %289 = dma.hbm_to_vmem [thread:$0]  %s5, 1024, %s284, [#allocation16], 128, 128, 8
        $region28: #{tpu_custom_call.1} parent=11 // pred_fallthru
          _
        // Predicated region
        $region29: #{tpu_custom_call.1} parent=11 // pred_check
          %p290 = pneg %p195
        $region30: #{tpu_custom_call.1} parent=11 // pred_check_branch
          %292 = sbr.rel (%p290) target = $region32
        $region31: #{tpu_custom_call.1} parent=11 // pred_region
          _
        $region32: #{tpu_custom_call.1} parent=11 // pred_fallthru
          _
      $region12: #{tpu_custom_call.1} parent=5 // pred_fallthru
        _
      %p293 = scmp.lt.s32.totalorder %s24, 2
      // Predicated region
      $region33: #{tpu_custom_call.1} parent=5 // pred_check
        %p294 = pneg %p293
      $region34: #{tpu_custom_call.1} parent=5 // pred_check_branch
        %296 = sbr.rel (%p294) target = $region36
      $region35: #{tpu_custom_call.1} parent=5 // pred_region
        // Predicated region
        $region37: #{tpu_custom_call.1} parent=35 // pred_check
          %p297 = pneg %p58
        $region38: #{tpu_custom_call.1} parent=35 // pred_check_branch
          %299 = sbr.rel (%p297) target = $region40
        $region39: #{tpu_custom_call.1} parent=35 // pred_region
          %s300 = sand.u32 %s48, 1
          %s301 = scalar_lea.sflag [#allocation7], %s300
          %s302 = sand.u32 %s48, 1
          %s303 = smul.addr %s302, 16
          %s304 = scalar_lea.vmem [#allocation6], %s303
          %s305 = smul.u32 2, %s32
          %s307 = ssub.s32 256, 256
          %308 = vsyncadd %s301, %s307
          %s309 = smul.addr %s31, 2
          %s310 = sadd.s32 %s305, %s309
          %s311 = smul.addr %s310, 128
          %s312 = scalar_lea.hbm %s0, %s311
          %s313 = sshll.u32 %s304, 4
          %s314 = int_to_ptr.vmem [resolvable:$true] %s313
          %319 = dma.hbm_to_vmem [thread:$0]  %s312, 256, %s314, %s301, 128, 128, 8
        $region40: #{tpu_custom_call.1} parent=35 // pred_fallthru
          _
        // Predicated region
        $region41: #{tpu_custom_call.1} parent=35 // pred_check
          %p320 = pneg %p84
        $region42: #{tpu_custom_call.1} parent=35 // pred_check_branch
          %322 = sbr.rel (%p320) target = $region44
        $region43: #{tpu_custom_call.1} parent=35 // pred_region
          %s323 = sand.u32 %s24, 1
          %s324 = scalar_lea.sflag [#allocation10], %s323
          %s325 = sand.u32 %s74, 1
          %s326 = smul.addr %s325, 8
          %s327 = scalar_lea.vmem [#allocation9], %s326
          %s329 = ssub.s32 128, 128
          %330 = vsyncadd %s324, %s329
          %s331 = smul.addr %s31, 128
          %s332 = scalar_lea.hbm %s1, %s331
          %s334 = sshll.u32 %s327, 4
          %s335 = int_to_ptr.vmem [resolvable:$true] %s334
          %337 = dma.hbm_to_vmem [thread:$0]  %s332, 128, %s335, %s324
        $region44: #{tpu_custom_call.1} parent=35 // pred_fallthru
          _
      $region36: #{tpu_custom_call.1} parent=5 // pred_fallthru
        _
      %p338 = scmp.le.s32.totalorder 1, %s24
      %p339 = scmp.lt.s32.totalorder %s24, 3
      %p340 = pnand %p338, %p339
      %p341 = pneg %p340
      // Predicated region
      $region45: #{tpu_custom_call.1} parent=5 // pred_check
        _
      $region46: #{tpu_custom_call.1} parent=5 // pred_check_branch
        %343 = sbr.rel (%p340) target = $region48
      $region47: #{tpu_custom_call.1} parent=5 // pred_region
        %s344 = ssub.s32 %s24, 1
        %s345 = sand.u32 %s51, 1
        %s346 = scalar_lea.sflag [#allocation7], %s345
        %s347 = sand.u32 %s51, 1
        %s348 = smul.addr %s347, 16
        %s349 = scalar_lea.vmem [#allocation6], %s348
        // Predicated region
        $region49: #{tpu_custom_call.1} parent=47 // pred_check
          %p350 = pneg %p64
        $region50: #{tpu_custom_call.1} parent=47 // pred_check_branch
          %352 = sbr.rel (%p350) target = $region52
        $region51: #{tpu_custom_call.1} parent=47 // pred_region
          %353 = dma.done %s346, 256
        $region52: #{tpu_custom_call.1} parent=47 // pred_fallthru
          _
        %s354 = sand.u32 %s29, 1
        %s355 = scalar_lea.sflag [#allocation10], %s354
        %s356 = sand.u32 %s77, 1
        %s357 = smul.addr %s356, 8
        %s358 = scalar_lea.vmem [#allocation9], %s357
        // Predicated region
        $region53: #{tpu_custom_call.1} parent=47 // pred_check
          %p359 = pneg %p90
        $region54: #{tpu_custom_call.1} parent=47 // pred_check_branch
          %361 = sbr.rel (%p359) target = $region56
        $region55: #{tpu_custom_call.1} parent=47 // pred_region
          %362 = dma.done %s355, 128
        $region56: #{tpu_custom_call.1} parent=47 // pred_fallthru
          _
        // Predicated region
        $region57: #{tpu_custom_call.1} parent=47 // pred_check
          %p363 = pneg %p111
        $region58: #{tpu_custom_call.1} parent=47 // pred_check_branch
          %365 = sbr.rel (%p363) target = $region60
        $region59: #{tpu_custom_call.1} parent=47 // pred_region
          %366 = dma.done [#allocation10], 512
        $region60: #{tpu_custom_call.1} parent=47 // pred_fallthru
          _
        // Predicated region
        $region61: #{tpu_custom_call.1} parent=47 // pred_check
          %p367 = pneg %p132
        $region62: #{tpu_custom_call.1} parent=47 // pred_check_branch
          %369 = sbr.rel (%p367) target = $region64
        $region63: #{tpu_custom_call.1} parent=47 // pred_region
          %370 = dma.done [#allocation13], 384
        $region64: #{tpu_custom_call.1} parent=47 // pred_fallthru
          _
        // Predicated region
        $region65: #{tpu_custom_call.1} parent=47 // pred_check
          %p371 = pneg %p153
        $region66: #{tpu_custom_call.1} parent=47 // pred_check_branch
          %373 = sbr.rel (%p371) target = $region68
        $region67: #{tpu_custom_call.1} parent=47 // pred_region
          %374 = dma.done [#allocation13], 384
        $region68: #{tpu_custom_call.1} parent=47 // pred_fallthru
          _
        // Predicated region
        $region69: #{tpu_custom_call.1} parent=47 // pred_check
          %p375 = pneg %p174
        $region70: #{tpu_custom_call.1} parent=47 // pred_check_branch
          %377 = sbr.rel (%p375) target = $region72
        $region71: #{tpu_custom_call.1} parent=47 // pred_region
          %378 = dma.done [#allocation16], 1024
        $region72: #{tpu_custom_call.1} parent=47 // pred_fallthru
          _
        %s379 = sand.u32 %s51, 1
        %s380 = scalar_lea.sflag [#allocation7], %s379
        %s381 = sand.u32 %s51, 1
        %s382 = smul.addr %s381, 16
        %s383 = scalar_lea.vmem [#allocation6], %s382
        %p384 = pneg %p64
        %p385 = pneg %p61
        %s386 = sand.u32 %s29, 1
        %s387 = scalar_lea.sflag [#allocation10], %s386
        %s388 = sand.u32 %s77, 1
        %s389 = smul.addr %s388, 8
        %s390 = scalar_lea.vmem [#allocation9], %s389
        %p391 = pneg %p90
        %p392 = pneg %p87
        %p393 = pneg %p111
        %p394 = pneg %p108
        %p395 = pneg %p132
        %p396 = pneg %p129
        %p397 = pneg %p153
        %p398 = pneg %p150
        %p399 = pneg %p174
        %p400 = pneg %p171
        %p401 = pneg %p195
        %p402 = pneg %p192
        %p403 = pneg %p223
        %p404 = pneg %p220
        %s405 = sand.u32 %s210, 1
        %s406 = scalar_lea.sflag [#allocation8], %s405
        %s407 = sand.u32 %s210, 1
        %s408 = smul.addr %s407, 16
        %s409 = scalar_lea.vmem [#allocation17], %s408
        %s410 = smul.u32 2, %s34
        %s411 = smul.u32 2, %s34
        %v412 = vld [vmem:[%s349] sm:$0xff]
        %v413 = vld [vmem:[%s349 + $0x8] sm:$0xff]
        %v414 = vld [vmem:[%s358] sm:$0xff]
        %v415 = vld [vmem:[#allocation11] sm:$0xff]
        %v416 = vld [vmem:[#allocation11 + $0x8] sm:$0xff]
        %v417 = vld [vmem:[#allocation11 + $0x10] sm:$0xff]
        %v418 = vld [vmem:[#allocation11 + $0x18] sm:$0xff]
        %v419 = vld [vmem:[#allocation12] sm:$0xff]
        %v420 = vld [vmem:[#allocation12 + $0x8] sm:$0xff]
        %v421 = vld [vmem:[#allocation12 + $0x10] sm:$0xff]
        %v422 = vld [vmem:[#allocation14] sm:$0xff]
        %v423 = vld [vmem:[#allocation14 + $0x8] sm:$0xff]
        %v424 = vld [vmem:[#allocation14 + $0x10] sm:$0xff]
        %vm425 = vcmask 261120
        %v427 = vsel %vm425, %v412, 0
        %v430 = vsel %vm425, %v413, 0
        %432 = vmatprep.subr.mxu0 0.0
        %433 = vmatpush1.msra.mxu0 %v415
        %434 = vmatprep.subr.mxu0 0.0
        %435 = vmatpush1.msra.mxu0 %v416
        %436 = vmatprep.subr.mxu0 0.0
        %437 = vmatpush1.msra.mxu0 %v417
        %438 = vmatprep.subr.mxu0 0.0
        %439 = vmatpush1.msra.mxu0 %v418
        %440 = vmatprep.subr.mxu0 0.0
        %441 = vmatpush1.msra.mxu0 0.0
        %442 = vmatprep.subr.mxu0 0.0
        %443 = vmatpush1.msra.mxu0 0.0
        %444 = vmatprep.subr.mxu0 0.0
        %445 = vmatpush1.msra.mxu0 0.0
        %446 = vmatprep.subr.mxu0 0.0
        %447 = vmatpush1.msra.mxu0 0.0
        %448 = vmatprep.subr.mxu0 0.0
        %449 = vmatpush1.msra.mxu0 0.0
        %450 = vmatprep.subr.mxu0 0.0
        %451 = vmatpush1.msra.mxu0 0.0
        %452 = vmatprep.subr.mxu0 0.0
        %453 = vmatpush1.msra.mxu0 0.0
        %454 = vmatprep.subr.mxu0 0.0
        %455 = vmatpush1.msra.mxu0 0.0
        %456 = vmatprep.subr.mxu0 0.0
        %457 = vmatpush1.msra.mxu0 0.0
        %458 = vmatprep.subr.mxu0 0.0
        %459 = vmatpush1.msra.mxu0 0.0
        %460 = vmatprep.subr.mxu0 0.0
        %461 = vmatpush1.msra.mxu0 0.0
        %462 = vmatprep.subr.mxu0 0.0
        %463 = vmatpush1.msra.mxu0 0.0
        %464 = vmatprep.subr.mxu0 0.0
        %465 = vmatpush1.msra.mxu0 0.0
        %466 = vmatprep.subr.mxu0 0.0
        %467 = vmatpush1.msra.mxu0 0.0
        %468 = vmatprep.subr.mxu0 0.0
        %469 = vmatpush1.msra.mxu0 0.0
        %470 = vmatprep.subr.mxu0 0.0
        %471 = vmatpush1.msra.mxu0 0.0
        %472 = vmatprep.subr.mxu0 0.0
        %473 = vmatpush1.msra.mxu0 0.0
        %474 = vmatprep.subr.mxu0 0.0
        %475 = vmatpush1.msra.mxu0 0.0
        %476 = vmatprep.subr.mxu0 0.0
        %477 = vmatpush1.msra.mxu0 0.0
        %478 = vmatprep.subr.mxu0 0.0
        %479 = vmatpush1.msra.mxu0 0.0
        %480 = vmatprep.subr.mxu0 0.0
        %481 = vmatpush1.msra.mxu0 0.0
        %482 = vmatprep.subr.mxu0 0.0
        %483 = vmatpush1.msra.mxu0 0.0
        %484 = vmatprep.subr.mxu0 0.0
        %485 = vmatpush1.msra.mxu0 0.0
        %486 = vmatprep.subr.mxu0 0.0
        %487 = vmatpush1.msra.mxu0 0.0
        %488 = vmatprep.subr.mxu0 0.0
        %489 = vmatpush1.msra.mxu0 0.0
        %490 = vmatprep.subr.mxu0 0.0
        %491 = vmatpush1.msra.mxu0 0.0
        %492 = vmatprep.subr.mxu0 0.0
        %493 = vmatpush1.msra.mxu0 0.0
        %494 = vmatprep.subr.mxu0 0.0
        %495 = vmatpush1.msra.mxu0 0.0
        %496 = vmatprep.mubr.f32.mxu0 0.0
        %497 = vmatmul.mubr.f32.gmra.mrb[0].mxu0 %v427
        %v498 = vpop.f32.mrb[0].mxu0
        %v499 = vadd.f32 0.0, %v498
        %v500 = vpop.f32.mrb[0].mxu0
        %501 = vmatprep.mubr.f32.mxu0 0.0
        %502 = vmatmul.mubr.f32.gmra.mrb[0].mxu0 %v430
        %v503 = vpop.f32.mrb[0].mxu0
        %v504 = vadd.f32 0.0, %v503
        %v505 = vpop.f32.mrb[0].mxu0
        %506 = vdwg.mxu0
        %vm507 = vcmask 523264
        %508 = vst.msk [vmem:[#allocation2] sm:$0xff] %vm507, %v499
        %509 = vst.msk [vmem:[#allocation2 + $0x8] sm:$0xff] %vm507, %v504
        %vm510 = vcmask 195584
        %v512 = vsel %vm510, %v414, 0
        %514 = vmatprep.subr.mxu0 0.0
        %515 = vmatpush1.msra.mxu0 %v419
        %516 = vmatprep.subr.mxu0 0.0
        %517 = vmatpush1.msra.mxu0 %v420
        %518 = vmatprep.subr.mxu0 0.0
        %519 = vmatpush1.msra.mxu0 %v421
        %520 = vmatprep.subr.mxu0 0.0
        %521 = vmatpush1.msra.mxu0 0.0
        %522 = vmatprep.subr.mxu0 0.0
        %523 = vmatpush1.msra.mxu0 0.0
        %524 = vmatprep.subr.mxu0 0.0
        %525 = vmatpush1.msra.mxu0 0.0
        %526 = vmatprep.subr.mxu0 0.0
        %527 = vmatpush1.msra.mxu0 0.0
        %528 = vmatprep.subr.mxu0 0.0
        %529 = vmatpush1.msra.mxu0 0.0
        %530 = vmatprep.subr.mxu0 0.0
        %531 = vmatpush1.msra.mxu0 0.0
        %532 = vmatprep.subr.mxu0 0.0
        %533 = vmatpush1.msra.mxu0 0.0
        %534 = vmatprep.subr.mxu0 0.0
        %535 = vmatpush1.msra.mxu0 0.0
        %536 = vmatprep.subr.mxu0 0.0
        %537 = vmatpush1.msra.mxu0 0.0
        %538 = vmatprep.subr.mxu0 0.0
        %539 = vmatpush1.msra.mxu0 0.0
        %540 = vmatprep.subr.mxu0 0.0
        %541 = vmatpush1.msra.mxu0 0.0
        %542 = vmatprep.subr.mxu0 0.0
        %543 = vmatpush1.msra.mxu0 0.0
        %544 = vmatprep.subr.mxu0 0.0
        %545 = vmatpush1.msra.mxu0 0.0
        %546 = vmatprep.subr.mxu0 0.0
        %547 = vmatpush1.msra.mxu0 0.0
        %548 = vmatprep.subr.mxu0 0.0
        %549 = vmatpush1.msra.mxu0 0.0
        %550 = vmatprep.subr.mxu0 0.0
        %551 = vmatpush1.msra.mxu0 0.0
        %552 = vmatprep.subr.mxu0 0.0
        %553 = vmatpush1.msra.mxu0 0.0
        %554 = vmatprep.subr.mxu0 0.0
        %555 = vmatpush1.msra.mxu0 0.0
        %556 = vmatprep.subr.mxu0 0.0
        %557 = vmatpush1.msra.mxu0 0.0
        %558 = vmatprep.subr.mxu0 0.0
        %559 = vmatpush1.msra.mxu0 0.0
        %560 = vmatprep.subr.mxu0 0.0
        %561 = vmatpush1.msra.mxu0 0.0
        %562 = vmatprep.subr.mxu0 0.0
        %563 = vmatpush1.msra.mxu0 0.0
        %564 = vmatprep.subr.mxu0 0.0
        %565 = vmatpush1.msra.mxu0 0.0
        %566 = vmatprep.subr.mxu0 0.0
        %567 = vmatpush1.msra.mxu0 0.0
        %568 = vmatprep.subr.mxu0 0.0
        %569 = vmatpush1.msra.mxu0 0.0
        %570 = vmatprep.subr.mxu0 0.0
        %571 = vmatpush1.msra.mxu0 0.0
        %572 = vmatprep.subr.mxu0 0.0
        %573 = vmatpush1.msra.mxu0 0.0
        %574 = vmatprep.subr.mxu0 0.0
        %575 = vmatpush1.msra.mxu0 0.0
        %576 = vmatprep.subr.mxu0 0.0
        %577 = vmatpush1.msra.mxu0 0.0
        %578 = vmatprep.mubr.f32.mxu0 0.0
        %579 = vmatmul.mubr.f32.gmra.mrb[0].mxu0 %v512
        %v580 = vpop.f32.mrb[0].mxu0
        %v581 = vadd.f32 0.0, %v580
        %v582 = vpop.f32.mrb[0].mxu0
        %583 = vdwg.mxu0
        %584 = vst.msk [vmem:[#allocation3] sm:$0xff] %vm507, %v581
        %585 = vmatprep.subr.mxu0 0.0
        %586 = vmatpush1.msra.mxu0 %v422
        %587 = vmatprep.subr.mxu0 0.0
        %588 = vmatpush1.msra.mxu0 %v423
        %589 = vmatprep.subr.mxu0 0.0
        %590 = vmatpush1.msra.mxu0 %v424
        %591 = vmatprep.subr.mxu0 0.0
        %592 = vmatpush1.msra.mxu0 0.0
        %593 = vmatprep.subr.mxu0 0.0
        %594 = vmatpush1.msra.mxu0 0.0
        %595 = vmatprep.subr.mxu0 0.0
        %596 = vmatpush1.msra.mxu0 0.0
        %597 = vmatprep.subr.mxu0 0.0
        %598 = vmatpush1.msra.mxu0 0.0
        %599 = vmatprep.subr.mxu0 0.0
        %600 = vmatpush1.msra.mxu0 0.0
        %601 = vmatprep.subr.mxu0 0.0
        %602 = vmatpush1.msra.mxu0 0.0
        %603 = vmatprep.subr.mxu0 0.0
        %604 = vmatpush1.msra.mxu0 0.0
        %605 = vmatprep.subr.mxu0 0.0
        %606 = vmatpush1.msra.mxu0 0.0
        %607 = vmatprep.subr.mxu0 0.0
        %608 = vmatpush1.msra.mxu0 0.0
        %609 = vmatprep.subr.mxu0 0.0
        %610 = vmatpush1.msra.mxu0 0.0
        %611 = vmatprep.subr.mxu0 0.0
        %612 = vmatpush1.msra.mxu0 0.0
        %613 = vmatprep.subr.mxu0 0.0
        %614 = vmatpush1.msra.mxu0 0.0
        %615 = vmatprep.subr.mxu0 0.0
        %616 = vmatpush1.msra.mxu0 0.0
        %617 = vmatprep.subr.mxu0 0.0
        %618 = vmatpush1.msra.mxu0 0.0
        %619 = vmatprep.subr.mxu0 0.0
        %620 = vmatpush1.msra.mxu0 0.0
        %621 = vmatprep.subr.mxu0 0.0
        %622 = vmatpush1.msra.mxu0 0.0
        %623 = vmatprep.subr.mxu0 0.0
        %624 = vmatpush1.msra.mxu0 0.0
        %625 = vmatprep.subr.mxu0 0.0
        %626 = vmatpush1.msra.mxu0 0.0
        %627 = vmatprep.subr.mxu0 0.0
        %628 = vmatpush1.msra.mxu0 0.0
        %629 = vmatprep.subr.mxu0 0.0
        %630 = vmatpush1.msra.mxu0 0.0
        %631 = vmatprep.subr.mxu0 0.0
        %632 = vmatpush1.msra.mxu0 0.0
        %633 = vmatprep.subr.mxu0 0.0
        %634 = vmatpush1.msra.mxu0 0.0
        %635 = vmatprep.subr.mxu0 0.0
        %636 = vmatpush1.msra.mxu0 0.0
        %637 = vmatprep.subr.mxu0 0.0
        %638 = vmatpush1.msra.mxu0 0.0
        %639 = vmatprep.subr.mxu0 0.0
        %640 = vmatpush1.msra.mxu0 0.0
        %641 = vmatprep.subr.mxu0 0.0
        %642 = vmatpush1.msra.mxu0 0.0
        %643 = vmatprep.subr.mxu0 0.0
        %644 = vmatpush1.msra.mxu0 0.0
        %645 = vmatprep.subr.mxu0 0.0
        %646 = vmatpush1.msra.mxu0 0.0
        %647 = vmatprep.subr.mxu0 0.0
        %648 = vmatpush1.msra.mxu0 0.0
        %649 = vmatprep.mubr.f32.mxu0 0.0
        %650 = vmatmul.mubr.f32.gmra.mrb[0].mxu0 %v512
        %v651 = vpop.f32.mrb[0].mxu0
        %v652 = vadd.f32 0.0, %v651
        %v653 = vpop.f32.mrb[0].mxu0
        %654 = vdwg.mxu0
        %655 = vst.msk [vmem:[#allocation4] sm:$0xff] %vm507, %v652
        %v656 = vld [vmem:[#allocation2] sm:$0xff]
        %v657 = vld [vmem:[#allocation2 + $0x8] sm:$0xff]
        %v658 = vld [vmem:[#allocation3] sm:$0xff]
        %v659 = vld [vmem:[#allocation4] sm:$0xff]
        %vm660 = vcmask 130048
        %v662 = vsel %vm660, %v656, 0
        %v665 = vsel %vm660, %v657, 0
        %v668 = vsel %vm660, %v658, 0
        %670 = vmatprep.subr.mxu0 0.0
        %671 = vmatpush1.xpose.msra.mxu0 %v668
        %672 = vmatprep.subr.mxu0 0.0
        %673 = vmatpush1.xpose.msra.mxu0 0.0
        %674 = vmatprep.subr.mxu0 0.0
        %675 = vmatpush1.xpose.msra.mxu0 0.0
        %676 = vmatprep.subr.mxu0 0.0
        %677 = vmatpush1.xpose.msra.mxu0 0.0
        %678 = vmatprep.subr.mxu0 0.0
        %679 = vmatpush1.xpose.msra.mxu0 0.0
        %680 = vmatprep.subr.mxu0 0.0
        %681 = vmatpush1.xpose.msra.mxu0 0.0
        %682 = vmatprep.subr.mxu0 0.0
        %683 = vmatpush1.xpose.msra.mxu0 0.0
        %684 = vmatprep.subr.mxu0 0.0
        %685 = vmatpush1.xpose.msra.mxu0 0.0
        %686 = vmatprep.subr.mxu0 0.0
        %687 = vmatpush1.xpose.msra.mxu0 0.0
        %688 = vmatprep.subr.mxu0 0.0
        %689 = vmatpush1.xpose.msra.mxu0 0.0
        %690 = vmatprep.subr.mxu0 0.0
        %691 = vmatpush1.xpose.msra.mxu0 0.0
        %692 = vmatprep.subr.mxu0 0.0
        %693 = vmatpush1.xpose.msra.mxu0 0.0
        %694 = vmatprep.subr.mxu0 0.0
        %695 = vmatpush1.xpose.msra.mxu0 0.0
        %696 = vmatprep.subr.mxu0 0.0
        %697 = vmatpush1.xpose.msra.mxu0 0.0
        %698 = vmatprep.subr.mxu0 0.0
        %699 = vmatpush1.xpose.msra.mxu0 0.0
        %700 = vmatprep.subr.mxu0 0.0
        %701 = vmatpush1.xpose.msra.mxu0 0.0
        %702 = vmatprep.subr.mxu0 0.0
        %703 = vmatpush1.xpose.msra.mxu0 0.0
        %704 = vmatprep.subr.mxu0 0.0
        %705 = vmatpush1.xpose.msra.mxu0 0.0
        %706 = vmatprep.subr.mxu0 0.0
        %707 = vmatpush1.xpose.msra.mxu0 0.0
        %708 = vmatprep.subr.mxu0 0.0
        %709 = vmatpush1.xpose.msra.mxu0 0.0
        %710 = vmatprep.subr.mxu0 0.0
        %711 = vmatpush1.xpose.msra.mxu0 0.0
        %712 = vmatprep.subr.mxu0 0.0
        %713 = vmatpush1.xpose.msra.mxu0 0.0
        %714 = vmatprep.subr.mxu0 0.0
        %715 = vmatpush1.xpose.msra.mxu0 0.0
        %716 = vmatprep.subr.mxu0 0.0
        %717 = vmatpush1.xpose.msra.mxu0 0.0
        %718 = vmatprep.subr.mxu0 0.0
        %719 = vmatpush1.xpose.msra.mxu0 0.0
        %720 = vmatprep.subr.mxu0 0.0
        %721 = vmatpush1.xpose.msra.mxu0 0.0
        %722 = vmatprep.subr.mxu0 0.0
        %723 = vmatpush1.xpose.msra.mxu0 0.0
        %724 = vmatprep.subr.mxu0 0.0
        %725 = vmatpush1.xpose.msra.mxu0 0.0
        %726 = vmatprep.subr.mxu0 0.0
        %727 = vmatpush1.xpose.msra.mxu0 0.0
        %728 = vmatprep.subr.mxu0 0.0
        %729 = vmatpush1.xpose.msra.mxu0 0.0
        %730 = vmatprep.subr.mxu0 0.0
        %731 = vmatpush1.xpose.msra.mxu0 0.0
        %732 = vmatprep.subr.mxu0 0.0
        %733 = vmatpush1.xpose.msra.mxu0 0.0
        %734 = vmatprep.mubr.f32.mxu0 0.0
        %735 = vmatmul.mubr.f32.gmra.mrb[0].mxu0 %v662
        %v736 = vpop.f32.mrb[0].mxu0
        %v737 = vadd.f32 0.0, %v736
        %v738 = vpop.f32.mrb[0].mxu0
        %739 = vmatprep.mubr.f32.mxu0 0.0
        %740 = vmatmul.mubr.f32.gmra.mrb[0].mxu0 %v665
        %v741 = vpop.f32.mrb[0].mxu0
        %v742 = vadd.f32 0.0, %v741
        %v743 = vpop.f32.mrb[0].mxu0
        %744 = vdwg.mxu0
        %vm745 = vcmask 64512
        %v746 = vsel %vm745, %v737, -inf
        %747 = vmax.xlane.f32.xlu0 %v746
        %v748 = vpop.xlane.xlu0 %747
        %v749 = vsel %vm745, %v742, -inf
        %750 = vmax.xlane.f32.xlu0 %v749
        %v751 = vpop.xlane.xlu0 %750
        %v752 = vsub.f32 %v737, %v748
        %v753 = vsub.f32 %v742, %v751
        %v754 = vmul.f32 %v752, 1.442695
        %v755 = vpow.pop %v754
        %v756 = vmul.f32 %v753, 1.442695
        %v757 = vpow.pop %v756
        %v758 = vsel %vm745, %v755, 0.0
        %759 = vadd.xlane.f32.xlu0 %v758
        %v760 = vpop.xlane.xlu0 %759
        %v761 = vsel %vm745, %v757, 0.0
        %762 = vadd.xlane.f32.xlu0 %v761
        %v763 = vpop.xlane.xlu0 %762
        %v764 = vrcp.pop %v760
        %v765 = vrcp.pop %v763
        %v766 = vmul.f32 %v755, %v764
        %v767 = vmul.f32 %v757, %v765
        %v769 = vsel %vm745, %v766, 0
        %v772 = vsel %vm745, %v767, 0
        %774 = vmatprep.subr.mxu0 0.0
        %775 = vmatpush1.msra.mxu0 %v659
        %776 = vmatprep.subr.mxu0 0.0
        %777 = vmatpush1.msra.mxu0 0.0
        %778 = vmatprep.subr.mxu0 0.0
        %779 = vmatpush1.msra.mxu0 0.0
        %780 = vmatprep.subr.mxu0 0.0
        %781 = vmatpush1.msra.mxu0 0.0
        %782 = vmatprep.subr.mxu0 0.0
        %783 = vmatpush1.msra.mxu0 0.0
        %784 = vmatprep.subr.mxu0 0.0
        %785 = vmatpush1.msra.mxu0 0.0
        %786 = vmatprep.subr.mxu0 0.0
        %787 = vmatpush1.msra.mxu0 0.0
        %788 = vmatprep.subr.mxu0 0.0
        %789 = vmatpush1.msra.mxu0 0.0
        %790 = vmatprep.subr.mxu0 0.0
        %791 = vmatpush1.msra.mxu0 0.0
        %792 = vmatprep.subr.mxu0 0.0
        %793 = vmatpush1.msra.mxu0 0.0
        %794 = vmatprep.subr.mxu0 0.0
        %795 = vmatpush1.msra.mxu0 0.0
        %796 = vmatprep.subr.mxu0 0.0
        %797 = vmatpush1.msra.mxu0 0.0
        %798 = vmatprep.subr.mxu0 0.0
        %799 = vmatpush1.msra.mxu0 0.0
        %800 = vmatprep.subr.mxu0 0.0
        %801 = vmatpush1.msra.mxu0 0.0
        %802 = vmatprep.subr.mxu0 0.0
        %803 = vmatpush1.msra.mxu0 0.0
        %804 = vmatprep.subr.mxu0 0.0
        %805 = vmatpush1.msra.mxu0 0.0
        %806 = vmatprep.subr.mxu0 0.0
        %807 = vmatpush1.msra.mxu0 0.0
        %808 = vmatprep.subr.mxu0 0.0
        %809 = vmatpush1.msra.mxu0 0.0
        %810 = vmatprep.subr.mxu0 0.0
        %811 = vmatpush1.msra.mxu0 0.0
        %812 = vmatprep.subr.mxu0 0.0
        %813 = vmatpush1.msra.mxu0 0.0
        %814 = vmatprep.subr.mxu0 0.0
        %815 = vmatpush1.msra.mxu0 0.0
        %816 = vmatprep.subr.mxu0 0.0
        %817 = vmatpush1.msra.mxu0 0.0
        %818 = vmatprep.subr.mxu0 0.0
        %819 = vmatpush1.msra.mxu0 0.0
        %820 = vmatprep.subr.mxu0 0.0
        %821 = vmatpush1.msra.mxu0 0.0
        %822 = vmatprep.subr.mxu0 0.0
        %823 = vmatpush1.msra.mxu0 0.0
        %824 = vmatprep.subr.mxu0 0.0
        %825 = vmatpush1.msra.mxu0 0.0
        %826 = vmatprep.subr.mxu0 0.0
        %827 = vmatpush1.msra.mxu0 0.0
        %828 = vmatprep.subr.mxu0 0.0
        %829 = vmatpush1.msra.mxu0 0.0
        %830 = vmatprep.subr.mxu0 0.0
        %831 = vmatpush1.msra.mxu0 0.0
        %832 = vmatprep.subr.mxu0 0.0
        %833 = vmatpush1.msra.mxu0 0.0
        %834 = vmatprep.subr.mxu0 0.0
        %835 = vmatpush1.msra.mxu0 0.0
        %836 = vmatprep.subr.mxu0 0.0
        %837 = vmatpush1.msra.mxu0 0.0
        %838 = vmatprep.mubr.f32.mxu0 0.0
        %839 = vmatmul.mubr.f32.gmra.mrb[0].mxu0 %v769
        %v840 = vpop.f32.mrb[0].mxu0
        %v841 = vadd.f32 0.0, %v840
        %v842 = vpop.f32.mrb[0].mxu0
        %843 = vmatprep.mubr.f32.mxu0 0.0
        %844 = vmatmul.mubr.f32.gmra.mrb[0].mxu0 %v772
        %v845 = vpop.f32.mrb[0].mxu0
        %v846 = vadd.f32 0.0, %v845
        %v847 = vpop.f32.mrb[0].mxu0
        %848 = vdwg.mxu0
        %849 = vst.msk [vmem:[#allocation5] sm:$0xff] %vm660, %v841
        %850 = vst.msk [vmem:[#allocation5 + $0x8] sm:$0xff] %vm660, %v846
        %v851 = vld [vmem:[#allocation2] sm:$0xff]
        %v852 = vld [vmem:[#allocation2 + $0x8] sm:$0xff]
        %v853 = vld [vmem:[#allocation3] sm:$0xff]
        %v854 = vld [vmem:[#allocation4] sm:$0xff]
        %857 = vrot.lane.b32.xlu0 %v851, 112
        %v858 = vpop.permute.xlu0 %857
        %859 = vrot.lane.b32.xlu0 %v852, 112
        %v860 = vpop.permute.xlu0 %859
        %862 = vrot.lane.b32.xlu0 %v853, 112
        %v863 = vpop.permute.xlu0 %862
        %v864 = vsel %vm660, %v858, 0
        %v866 = vsel %vm660, %v860, 0
        %v868 = vsel %vm660, %v863, 0
        %870 = vmatprep.subr.mxu0 0.0
        %871 = vmatpush1.xpose.msra.mxu0 %v868
        %872 = vmatprep.subr.mxu0 0.0
        %873 = vmatpush1.xpose.msra.mxu0 0.0
        %874 = vmatprep.subr.mxu0 0.0
        %875 = vmatpush1.xpose.msra.mxu0 0.0
        %876 = vmatprep.subr.mxu0 0.0
        %877 = vmatpush1.xpose.msra.mxu0 0.0
        %878 = vmatprep.subr.mxu0 0.0
        %879 = vmatpush1.xpose.msra.mxu0 0.0
        %880 = vmatprep.subr.mxu0 0.0
        %881 = vmatpush1.xpose.msra.mxu0 0.0
        %882 = vmatprep.subr.mxu0 0.0
        %883 = vmatpush1.xpose.msra.mxu0 0.0
        %884 = vmatprep.subr.mxu0 0.0
        %885 = vmatpush1.xpose.msra.mxu0 0.0
        %886 = vmatprep.subr.mxu0 0.0
        %887 = vmatpush1.xpose.msra.mxu0 0.0
        %888 = vmatprep.subr.mxu0 0.0
        %889 = vmatpush1.xpose.msra.mxu0 0.0
        %890 = vmatprep.subr.mxu0 0.0
        %891 = vmatpush1.xpose.msra.mxu0 0.0
        %892 = vmatprep.subr.mxu0 0.0
        %893 = vmatpush1.xpose.msra.mxu0 0.0
        %894 = vmatprep.subr.mxu0 0.0
        %895 = vmatpush1.xpose.msra.mxu0 0.0
        %896 = vmatprep.subr.mxu0 0.0
        %897 = vmatpush1.xpose.msra.mxu0 0.0
        %898 = vmatprep.subr.mxu0 0.0
        %899 = vmatpush1.xpose.msra.mxu0 0.0
        %900 = vmatprep.subr.mxu0 0.0
        %901 = vmatpush1.xpose.msra.mxu0 0.0
        %902 = vmatprep.subr.mxu0 0.0
        %903 = vmatpush1.xpose.msra.mxu0 0.0
        %904 = vmatprep.subr.mxu0 0.0
        %905 = vmatpush1.xpose.msra.mxu0 0.0
        %906 = vmatprep.subr.mxu0 0.0
        %907 = vmatpush1.xpose.msra.mxu0 0.0
        %908 = vmatprep.subr.mxu0 0.0
        %909 = vmatpush1.xpose.msra.mxu0 0.0
        %910 = vmatprep.subr.mxu0 0.0
        %911 = vmatpush1.xpose.msra.mxu0 0.0
        %912 = vmatprep.subr.mxu0 0.0
        %913 = vmatpush1.xpose.msra.mxu0 0.0
        %914 = vmatprep.subr.mxu0 0.0
        %915 = vmatpush1.xpose.msra.mxu0 0.0
        %916 = vmatprep.subr.mxu0 0.0
        %917 = vmatpush1.xpose.msra.mxu0 0.0
        %918 = vmatprep.subr.mxu0 0.0
        %919 = vmatpush1.xpose.msra.mxu0 0.0
        %920 = vmatprep.subr.mxu0 0.0
        %921 = vmatpush1.xpose.msra.mxu0 0.0
        %922 = vmatprep.subr.mxu0 0.0
        %923 = vmatpush1.xpose.msra.mxu0 0.0
        %924 = vmatprep.subr.mxu0 0.0
        %925 = vmatpush1.xpose.msra.mxu0 0.0
        %926 = vmatprep.subr.mxu0 0.0
        %927 = vmatpush1.xpose.msra.mxu0 0.0
        %928 = vmatprep.subr.mxu0 0.0
        %929 = vmatpush1.xpose.msra.mxu0 0.0
        %930 = vmatprep.subr.mxu0 0.0
        %931 = vmatpush1.xpose.msra.mxu0 0.0
        %932 = vmatprep.subr.mxu0 0.0
        %933 = vmatpush1.xpose.msra.mxu0 0.0
        %934 = vmatprep.mubr.f32.mxu0 0.0
        %935 = vmatmul.mubr.f32.gmra.mrb[0].mxu0 %v864
        %v936 = vpop.f32.mrb[0].mxu0
        %v937 = vadd.f32 0.0, %v936
        %v938 = vpop.f32.mrb[0].mxu0
        %939 = vmatprep.mubr.f32.mxu0 0.0
        %940 = vmatmul.mubr.f32.gmra.mrb[0].mxu0 %v866
        %v941 = vpop.f32.mrb[0].mxu0
        %v942 = vadd.f32 0.0, %v941
        %v943 = vpop.f32.mrb[0].mxu0
        %944 = vdwg.mxu0
        %v945 = vsel %vm745, %v937, -inf
        %946 = vmax.xlane.f32.xlu0 %v945
        %v947 = vpop.xlane.xlu0 %946
        %v948 = vsel %vm745, %v942, -inf
        %949 = vmax.xlane.f32.xlu0 %v948
        %v950 = vpop.xlane.xlu0 %949
        %v951 = vsub.f32 %v937, %v947
        %v952 = vsub.f32 %v942, %v950
        %v953 = vmul.f32 %v951, 1.442695
        %v954 = vpow.pop %v953
        %v955 = vmul.f32 %v952, 1.442695
        %v956 = vpow.pop %v955
        %v957 = vsel %vm745, %v954, 0.0
        %958 = vadd.xlane.f32.xlu0 %v957
        %v959 = vpop.xlane.xlu0 %958
        %v960 = vsel %vm745, %v956, 0.0
        %961 = vadd.xlane.f32.xlu0 %v960
        %v962 = vpop.xlane.xlu0 %961
        %v963 = vrcp.pop %v959
        %v964 = vrcp.pop %v962
        %v965 = vmul.f32 %v954, %v963
        %v966 = vmul.f32 %v956, %v964
        %968 = vrot.lane.b32.xlu0 %v854, 112
        %v969 = vpop.permute.xlu0 %968
        %v972 = vsel %vm745, %v965, 0
        %v975 = vsel %vm745, %v966, 0
        %977 = vmatprep.subr.mxu0 0.0
        %978 = vmatpush1.msra.mxu0 %v969
        %979 = vmatprep.subr.mxu0 0.0
        %980 = vmatpush1.msra.mxu0 0.0
        %981 = vmatprep.subr.mxu0 0.0
        %982 = vmatpush1.msra.mxu0 0.0
        %983 = vmatprep.subr.mxu0 0.0
        %984 = vmatpush1.msra.mxu0 0.0
        %985 = vmatprep.subr.mxu0 0.0
        %986 = vmatpush1.msra.mxu0 0.0
        %987 = vmatprep.subr.mxu0 0.0
        %988 = vmatpush1.msra.mxu0 0.0
        %989 = vmatprep.subr.mxu0 0.0
        %990 = vmatpush1.msra.mxu0 0.0
        %991 = vmatprep.subr.mxu0 0.0
        %992 = vmatpush1.msra.mxu0 0.0
        %993 = vmatprep.subr.mxu0 0.0
        %994 = vmatpush1.msra.mxu0 0.0
        %995 = vmatprep.subr.mxu0 0.0
        %996 = vmatpush1.msra.mxu0 0.0
        %997 = vmatprep.subr.mxu0 0.0
        %998 = vmatpush1.msra.mxu0 0.0
        %999 = vmatprep.subr.mxu0 0.0
        %1000 = vmatpush1.msra.mxu0 0.0
        %1001 = vmatprep.subr.mxu0 0.0
        %1002 = vmatpush1.msra.mxu0 0.0
        %1003 = vmatprep.subr.mxu0 0.0
        %1004 = vmatpush1.msra.mxu0 0.0
        %1005 = vmatprep.subr.mxu0 0.0
        %1006 = vmatpush1.msra.mxu0 0.0
        %1007 = vmatprep.subr.mxu0 0.0
        %1008 = vmatpush1.msra.mxu0 0.0
        %1009 = vmatprep.subr.mxu0 0.0
        %1010 = vmatpush1.msra.mxu0 0.0
        %1011 = vmatprep.subr.mxu0 0.0
        %1012 = vmatpush1.msra.mxu0 0.0
        %1013 = vmatprep.subr.mxu0 0.0
        %1014 = vmatpush1.msra.mxu0 0.0
        %1015 = vmatprep.subr.mxu0 0.0
        %1016 = vmatpush1.msra.mxu0 0.0
        %1017 = vmatprep.subr.mxu0 0.0
        %1018 = vmatpush1.msra.mxu0 0.0
        %1019 = vmatprep.subr.mxu0 0.0
        %1020 = vmatpush1.msra.mxu0 0.0
        %1021 = vmatprep.subr.mxu0 0.0
        %1022 = vmatpush1.msra.mxu0 0.0
        %1023 = vmatprep.subr.mxu0 0.0
        %1024 = vmatpush1.msra.mxu0 0.0
        %1025 = vmatprep.subr.mxu0 0.0
        %1026 = vmatpush1.msra.mxu0 0.0
        %1027 = vmatprep.subr.mxu0 0.0
        %1028 = vmatpush1.msra.mxu0 0.0
        %1029 = vmatprep.subr.mxu0 0.0
        %1030 = vmatpush1.msra.mxu0 0.0
        %1031 = vmatprep.subr.mxu0 0.0
        %1032 = vmatpush1.msra.mxu0 0.0
        %1033 = vmatprep.subr.mxu0 0.0
        %1034 = vmatpush1.msra.mxu0 0.0
        %1035 = vmatprep.subr.mxu0 0.0
        %1036 = vmatpush1.msra.mxu0 0.0
        %1037 = vmatprep.subr.mxu0 0.0
        %1038 = vmatpush1.msra.mxu0 0.0
        %1039 = vmatprep.subr.mxu0 0.0
        %1040 = vmatpush1.msra.mxu0 0.0
        %1041 = vmatprep.mubr.f32.mxu0 0.0
        %1042 = vmatmul.mubr.f32.gmra.mrb[0].mxu0 %v972
        %v1043 = vpop.f32.mrb[0].mxu0
        %v1044 = vadd.f32 0.0, %v1043
        %v1045 = vpop.f32.mrb[0].mxu0
        %1046 = vmatprep.mubr.f32.mxu0 0.0
        %1047 = vmatmul.mubr.f32.gmra.mrb[0].mxu0 %v975
        %v1048 = vpop.f32.mrb[0].mxu0
        %v1049 = vadd.f32 0.0, %v1048
        %v1050 = vpop.f32.mrb[0].mxu0
        %1051 = vdwg.mxu0
        %1054 = vrot.lane.b32.xlu0 %v1044, 16
        %v1055 = vpop.permute.xlu0 %1054
        %1056 = vrot.lane.b32.xlu0 %v1049, 16
        %v1057 = vpop.permute.xlu0 %1056
        %vm1060 = vcmask 261248
        %1061 = vst.msk [vmem:[#allocation5] sm:$0xff] %vm1060, %v1055
        %1062 = vst.msk [vmem:[#allocation5 + $0x8] sm:$0xff] %vm1060, %v1057
        %v1063 = vld [vmem:[#allocation2] sm:$0xff]
        %v1064 = vld [vmem:[#allocation2 + $0x8] sm:$0xff]
        %v1065 = vld [vmem:[#allocation3] sm:$0xff]
        %v1066 = vld [vmem:[#allocation4] sm:$0xff]
        %1069 = vrot.lane.b32.xlu0 %v1063, 96
        %v1070 = vpop.permute.xlu0 %1069
        %1071 = vrot.lane.b32.xlu0 %v1064, 96
        %v1072 = vpop.permute.xlu0 %1071
        %1074 = vrot.lane.b32.xlu0 %v1065, 96
        %v1075 = vpop.permute.xlu0 %1074
        %v1076 = vsel %vm660, %v1070, 0
        %v1078 = vsel %vm660, %v1072, 0
        %v1080 = vsel %vm660, %v1075, 0
        %1082 = vmatprep.subr.mxu0 0.0
        %1083 = vmatpush1.xpose.msra.mxu0 %v1080
        %1084 = vmatprep.subr.mxu0 0.0
        %1085 = vmatpush1.xpose.msra.mxu0 0.0
        %1086 = vmatprep.subr.mxu0 0.0
        %1087 = vmatpush1.xpose.msra.mxu0 0.0
        %1088 = vmatprep.subr.mxu0 0.0
        %1089 = vmatpush1.xpose.msra.mxu0 0.0
        %1090 = vmatprep.subr.mxu0 0.0
        %1091 = vmatpush1.xpose.msra.mxu0 0.0
        %1092 = vmatprep.subr.mxu0 0.0
        %1093 = vmatpush1.xpose.msra.mxu0 0.0
        %1094 = vmatprep.subr.mxu0 0.0
        %1095 = vmatpush1.xpose.msra.mxu0 0.0
        %1096 = vmatprep.subr.mxu0 0.0
        %1097 = vmatpush1.xpose.msra.mxu0 0.0
        %1098 = vmatprep.subr.mxu0 0.0
        %1099 = vmatpush1.xpose.msra.mxu0 0.0
        %1100 = vmatprep.subr.mxu0 0.0
        %1101 = vmatpush1.xpose.msra.mxu0 0.0
        %1102 = vmatprep.subr.mxu0 0.0
        %1103 = vmatpush1.xpose.msra.mxu0 0.0
        %1104 = vmatprep.subr.mxu0 0.0
        %1105 = vmatpush1.xpose.msra.mxu0 0.0
        %1106 = vmatprep.subr.mxu0 0.0
        %1107 = vmatpush1.xpose.msra.mxu0 0.0
        %1108 = vmatprep.subr.mxu0 0.0
        %1109 = vmatpush1.xpose.msra.mxu0 0.0
        %1110 = vmatprep.subr.mxu0 0.0
        %1111 = vmatpush1.xpose.msra.mxu0 0.0
        %1112 = vmatprep.subr.mxu0 0.0
        %1113 = vmatpush1.xpose.msra.mxu0 0.0
        %1114 = vmatprep.subr.mxu0 0.0
        %1115 = vmatpush1.xpose.msra.mxu0 0.0
        %1116 = vmatprep.subr.mxu0 0.0
        %1117 = vmatpush1.xpose.msra.mxu0 0.0
        %1118 = vmatprep.subr.mxu0 0.0
        %1119 = vmatpush1.xpose.msra.mxu0 0.0
        %1120 = vmatprep.subr.mxu0 0.0
        %1121 = vmatpush1.xpose.msra.mxu0 0.0
        %1122 = vmatprep.subr.mxu0 0.0
        %1123 = vmatpush1.xpose.msra.mxu0 0.0
        %1124 = vmatprep.subr.mxu0 0.0
        %1125 = vmatpush1.xpose.msra.mxu0 0.0
        %1126 = vmatprep.subr.mxu0 0.0
        %1127 = vmatpush1.xpose.msra.mxu0 0.0
        %1128 = vmatprep.subr.mxu0 0.0
        %1129 = vmatpush1.xpose.msra.mxu0 0.0
        %1130 = vmatprep.subr.mxu0 0.0
        %1131 = vmatpush1.xpose.msra.mxu0 0.0
        %1132 = vmatprep.subr.mxu0 0.0
        %1133 = vmatpush1.xpose.msra.mxu0 0.0
        %1134 = vmatprep.subr.mxu0 0.0
        %1135 = vmatpush1.xpose.msra.mxu0 0.0
        %1136 = vmatprep.subr.mxu0 0.0
        %1137 = vmatpush1.xpose.msra.mxu0 0.0
        %1138 = vmatprep.subr.mxu0 0.0
        %1139 = vmatpush1.xpose.msra.mxu0 0.0
        %1140 = vmatprep.subr.mxu0 0.0
        %1141 = vmatpush1.xpose.msra.mxu0 0.0
        %1142 = vmatprep.subr.mxu0 0.0
        %1143 = vmatpush1.xpose.msra.mxu0 0.0
        %1144 = vmatprep.subr.mxu0 0.0
        %1145 = vmatpush1.xpose.msra.mxu0 0.0
        %1146 = vmatprep.mubr.f32.mxu0 0.0
        %1147 = vmatmul.mubr.f32.gmra.mrb[0].mxu0 %v1076
        %v1148 = vpop.f32.mrb[0].mxu0
        %v1149 = vadd.f32 0.0, %v1148
        %v1150 = vpop.f32.mrb[0].mxu0
        %1151 = vmatprep.mubr.f32.mxu0 0.0
        %1152 = vmatmul.mubr.f32.gmra.mrb[0].mxu0 %v1078
        %v1153 = vpop.f32.mrb[0].mxu0
        %v1154 = vadd.f32 0.0, %v1153
        %v1155 = vpop.f32.mrb[0].mxu0
        %1156 = vdwg.mxu0
        %v1157 = vsel %vm745, %v1149, -inf
        %1158 = vmax.xlane.f32.xlu0 %v1157
        %v1159 = vpop.xlane.xlu0 %1158
        %v1160 = vsel %vm745, %v1154, -inf
        %1161 = vmax.xlane.f32.xlu0 %v1160
        %v1162 = vpop.xlane.xlu0 %1161
        %v1163 = vsub.f32 %v1149, %v1159
        %v1164 = vsub.f32 %v1154, %v1162
        %v1165 = vmul.f32 %v1163, 1.442695
        %v1166 = vpow.pop %v1165
        %v1167 = vmul.f32 %v1164, 1.442695
        %v1168 = vpow.pop %v1167
        %v1169 = vsel %vm745, %v1166, 0.0
        %1170 = vadd.xlane.f32.xlu0 %v1169
        %v1171 = vpop.xlane.xlu0 %1170
        %v1172 = vsel %vm745, %v1168, 0.0
        %1173 = vadd.xlane.f32.xlu0 %v1172
        %v1174 = vpop.xlane.xlu0 %1173
        %v1175 = vrcp.pop %v1171
        %v1176 = vrcp.pop %v1174
        %v1177 = vmul.f32 %v1166, %v1175
        %v1178 = vmul.f32 %v1168, %v1176
        %1180 = vrot.lane.b32.xlu0 %v1066, 96
        %v1181 = vpop.permute.xlu0 %1180
        %v1184 = vsel %vm745, %v1177, 0
        %v1187 = vsel %vm745, %v1178, 0
        %1189 = vmatprep.subr.mxu0 0.0
        %1190 = vmatpush1.msra.mxu0 %v1181
        %1191 = vmatprep.subr.mxu0 0.0
        %1192 = vmatpush1.msra.mxu0 0.0
        %1193 = vmatprep.subr.mxu0 0.0
        %1194 = vmatpush1.msra.mxu0 0.0
        %1195 = vmatprep.subr.mxu0 0.0
        %1196 = vmatpush1.msra.mxu0 0.0
        %1197 = vmatprep.subr.mxu0 0.0
        %1198 = vmatpush1.msra.mxu0 0.0
        %1199 = vmatprep.subr.mxu0 0.0
        %1200 = vmatpush1.msra.mxu0 0.0
        %1201 = vmatprep.subr.mxu0 0.0
        %1202 = vmatpush1.msra.mxu0 0.0
        %1203 = vmatprep.subr.mxu0 0.0
        %1204 = vmatpush1.msra.mxu0 0.0
        %1205 = vmatprep.subr.mxu0 0.0
        %1206 = vmatpush1.msra.mxu0 0.0
        %1207 = vmatprep.subr.mxu0 0.0
        %1208 = vmatpush1.msra.mxu0 0.0
        %1209 = vmatprep.subr.mxu0 0.0
        %1210 = vmatpush1.msra.mxu0 0.0
        %1211 = vmatprep.subr.mxu0 0.0
        %1212 = vmatpush1.msra.mxu0 0.0
        %1213 = vmatprep.subr.mxu0 0.0
        %1214 = vmatpush1.msra.mxu0 0.0
        %1215 = vmatprep.subr.mxu0 0.0
        %1216 = vmatpush1.msra.mxu0 0.0
        %1217 = vmatprep.subr.mxu0 0.0
        %1218 = vmatpush1.msra.mxu0 0.0
        %1219 = vmatprep.subr.mxu0 0.0
        %1220 = vmatpush1.msra.mxu0 0.0
        %1221 = vmatprep.subr.mxu0 0.0
        %1222 = vmatpush1.msra.mxu0 0.0
        %1223 = vmatprep.subr.mxu0 0.0
        %1224 = vmatpush1.msra.mxu0 0.0
        %1225 = vmatprep.subr.mxu0 0.0
        %1226 = vmatpush1.msra.mxu0 0.0
        %1227 = vmatprep.subr.mxu0 0.0
        %1228 = vmatpush1.msra.mxu0 0.0
        %1229 = vmatprep.subr.mxu0 0.0
        %1230 = vmatpush1.msra.mxu0 0.0
        %1231 = vmatprep.subr.mxu0 0.0
        %1232 = vmatpush1.msra.mxu0 0.0
        %1233 = vmatprep.subr.mxu0 0.0
        %1234 = vmatpush1.msra.mxu0 0.0
        %1235 = vmatprep.subr.mxu0 0.0
        %1236 = vmatpush1.msra.mxu0 0.0
        %1237 = vmatprep.subr.mxu0 0.0
        %1238 = vmatpush1.msra.mxu0 0.0
        %1239 = vmatprep.subr.mxu0 0.0
        %1240 = vmatpush1.msra.mxu0 0.0
        %1241 = vmatprep.subr.mxu0 0.0
        %1242 = vmatpush1.msra.mxu0 0.0
        %1243 = vmatprep.subr.mxu0 0.0
        %1244 = vmatpush1.msra.mxu0 0.0
        %1245 = vmatprep.subr.mxu0 0.0
        %1246 = vmatpush1.msra.mxu0 0.0
        %1247 = vmatprep.subr.mxu0 0.0
        %1248 = vmatpush1.msra.mxu0 0.0
        %1249 = vmatprep.subr.mxu0 0.0
        %1250 = vmatpush1.msra.mxu0 0.0
        %1251 = vmatprep.subr.mxu0 0.0
        %1252 = vmatpush1.msra.mxu0 0.0
        %1253 = vmatprep.mubr.f32.mxu0 0.0
        %1254 = vmatmul.mubr.f32.gmra.mrb[0].mxu0 %v1184
        %v1255 = vpop.f32.mrb[0].mxu0
        %v1256 = vadd.f32 0.0, %v1255
        %v1257 = vpop.f32.mrb[0].mxu0
        %1258 = vmatprep.mubr.f32.mxu0 0.0
        %1259 = vmatmul.mubr.f32.gmra.mrb[0].mxu0 %v1187
        %v1260 = vpop.f32.mrb[0].mxu0
        %v1261 = vadd.f32 0.0, %v1260
        %v1262 = vpop.f32.mrb[0].mxu0
        %1263 = vdwg.mxu0
        %1266 = vrot.lane.b32.xlu0 %v1256, 32
        %v1267 = vpop.permute.xlu0 %1266
        %1268 = vrot.lane.b32.xlu0 %v1261, 32
        %v1269 = vpop.permute.xlu0 %1268
        %vm1272 = vcmask 392448
        %1273 = vst.msk [vmem:[#allocation5] sm:$0xff] %vm1272, %v1267
        %1274 = vst.msk [vmem:[#allocation5 + $0x8] sm:$0xff] %vm1272, %v1269
        %v1275 = vld [vmem:[#allocation2] sm:$0xff]
        %v1276 = vld [vmem:[#allocation2 + $0x8] sm:$0xff]
        %v1277 = vld [vmem:[#allocation3] sm:$0xff]
        %v1278 = vld [vmem:[#allocation4] sm:$0xff]
        %1281 = vrot.lane.b32.xlu0 %v1275, 80
        %v1282 = vpop.permute.xlu0 %1281
        %1283 = vrot.lane.b32.xlu0 %v1276, 80
        %v1284 = vpop.permute.xlu0 %1283
        %1286 = vrot.lane.b32.xlu0 %v1277, 80
        %v1287 = vpop.permute.xlu0 %1286
        %v1288 = vsel %vm660, %v1282, 0
        %v1290 = vsel %vm660, %v1284, 0
        %v1292 = vsel %vm660, %v1287, 0
        %1294 = vmatprep.subr.mxu0 0.0
        %1295 = vmatpush1.xpose.msra.mxu0 %v1292
        %1296 = vmatprep.subr.mxu0 0.0
        %1297 = vmatpush1.xpose.msra.mxu0 0.0
        %1298 = vmatprep.subr.mxu0 0.0
        %1299 = vmatpush1.xpose.msra.mxu0 0.0
        %1300 = vmatprep.subr.mxu0 0.0
        %1301 = vmatpush1.xpose.msra.mxu0 0.0
        %1302 = vmatprep.subr.mxu0 0.0
        %1303 = vmatpush1.xpose.msra.mxu0 0.0
        %1304 = vmatprep.subr.mxu0 0.0
        %1305 = vmatpush1.xpose.msra.mxu0 0.0
        %1306 = vmatprep.subr.mxu0 0.0
        %1307 = vmatpush1.xpose.msra.mxu0 0.0
        %1308 = vmatprep.subr.mxu0 0.0
        %1309 = vmatpush1.xpose.msra.mxu0 0.0
        %1310 = vmatprep.subr.mxu0 0.0
        %1311 = vmatpush1.xpose.msra.mxu0 0.0
        %1312 = vmatprep.subr.mxu0 0.0
        %1313 = vmatpush1.xpose.msra.mxu0 0.0
        %1314 = vmatprep.subr.mxu0 0.0
        %1315 = vmatpush1.xpose.msra.mxu0 0.0
        %1316 = vmatprep.subr.mxu0 0.0
        %1317 = vmatpush1.xpose.msra.mxu0 0.0
        %1318 = vmatprep.subr.mxu0 0.0
        %1319 = vmatpush1.xpose.msra.mxu0 0.0
        %1320 = vmatprep.subr.mxu0 0.0
        %1321 = vmatpush1.xpose.msra.mxu0 0.0
        %1322 = vmatprep.subr.mxu0 0.0
        %1323 = vmatpush1.xpose.msra.mxu0 0.0
        %1324 = vmatprep.subr.mxu0 0.0
        %1325 = vmatpush1.xpose.msra.mxu0 0.0
        %1326 = vmatprep.subr.mxu0 0.0
        %1327 = vmatpush1.xpose.msra.mxu0 0.0
        %1328 = vmatprep.subr.mxu0 0.0
        %1329 = vmatpush1.xpose.msra.mxu0 0.0
        %1330 = vmatprep.subr.mxu0 0.0
        %1331 = vmatpush1.xpose.msra.mxu0 0.0
        %1332 = vmatprep.subr.mxu0 0.0
        %1333 = vmatpush1.xpose.msra.mxu0 0.0
        %1334 = vmatprep.subr.mxu0 0.0
        %1335 = vmatpush1.xpose.msra.mxu0 0.0
        %1336 = vmatprep.subr.mxu0 0.0
        %1337 = vmatpush1.xpose.msra.mxu0 0.0
        %1338 = vmatprep.subr.mxu0 0.0
        %1339 = vmatpush1.xpose.msra.mxu0 0.0
        %1340 = vmatprep.subr.mxu0 0.0
        %1341 = vmatpush1.xpose.msra.mxu0 0.0
        %1342 = vmatprep.subr.mxu0 0.0
        %1343 = vmatpush1.xpose.msra.mxu0 0.0
        %1344 = vmatprep.subr.mxu0 0.0
        %1345 = vmatpush1.xpose.msra.mxu0 0.0
        %1346 = vmatprep.subr.mxu0 0.0
        %1347 = vmatpush1.xpose.msra.mxu0 0.0
        %1348 = vmatprep.subr.mxu0 0.0
        %1349 = vmatpush1.xpose.msra.mxu0 0.0
        %1350 = vmatprep.subr.mxu0 0.0
        %1351 = vmatpush1.xpose.msra.mxu0 0.0
        %1352 = vmatprep.subr.mxu0 0.0
        %1353 = vmatpush1.xpose.msra.mxu0 0.0
        %1354 = vmatprep.subr.mxu0 0.0
        %1355 = vmatpush1.xpose.msra.mxu0 0.0
        %1356 = vmatprep.subr.mxu0 0.0
        %1357 = vmatpush1.xpose.msra.mxu0 0.0
        %1358 = vmatprep.mubr.f32.mxu0 0.0
        %1359 = vmatmul.mubr.f32.gmra.mrb[0].mxu0 %v1288
        %v1360 = vpop.f32.mrb[0].mxu0
        %v1361 = vadd.f32 0.0, %v1360
        %v1362 = vpop.f32.mrb[0].mxu0
        %1363 = vmatprep.mubr.f32.mxu0 0.0
        %1364 = vmatmul.mubr.f32.gmra.mrb[0].mxu0 %v1290
        %v1365 = vpop.f32.mrb[0].mxu0
        %v1366 = vadd.f32 0.0, %v1365
        %v1367 = vpop.f32.mrb[0].mxu0
        %1368 = vdwg.mxu0
        %v1369 = vsel %vm745, %v1361, -inf
        %1370 = vmax.xlane.f32.xlu0 %v1369
        %v1371 = vpop.xlane.xlu0 %1370
        %v1372 = vsel %vm745, %v1366, -inf
        %1373 = vmax.xlane.f32.xlu0 %v1372
        %v1374 = vpop.xlane.xlu0 %1373
        %v1375 = vsub.f32 %v1361, %v1371
        %v1376 = vsub.f32 %v1366, %v1374
        %v1377 = vmul.f32 %v1375, 1.442695
        %v1378 = vpow.pop %v1377
        %v1379 = vmul.f32 %v1376, 1.442695
        %v1380 = vpow.pop %v1379
        %v1381 = vsel %vm745, %v1378, 0.0
        %1382 = vadd.xlane.f32.xlu0 %v1381
        %v1383 = vpop.xlane.xlu0 %1382
        %v1384 = vsel %vm745, %v1380, 0.0
        %1385 = vadd.xlane.f32.xlu0 %v1384
        %v1386 = vpop.xlane.xlu0 %1385
        %v1387 = vrcp.pop %v1383
        %v1388 = vrcp.pop %v1386
        %v1389 = vmul.f32 %v1378, %v1387
        %v1390 = vmul.f32 %v1380, %v1388
        %1392 = vrot.lane.b32.xlu0 %v1278, 80
        %v1393 = vpop.permute.xlu0 %1392
        %v1396 = vsel %vm745, %v1389, 0
        %v1399 = vsel %vm745, %v1390, 0
        %1401 = vmatprep.subr.mxu0 0.0
        %1402 = vmatpush1.msra.mxu0 %v1393
        %1403 = vmatprep.subr.mxu0 0.0
        %1404 = vmatpush1.msra.mxu0 0.0
        %1405 = vmatprep.subr.mxu0 0.0
        %1406 = vmatpush1.msra.mxu0 0.0
        %1407 = vmatprep.subr.mxu0 0.0
        %1408 = vmatpush1.msra.mxu0 0.0
        %1409 = vmatprep.subr.mxu0 0.0
        %1410 = vmatpush1.msra.mxu0 0.0
        %1411 = vmatprep.subr.mxu0 0.0
        %1412 = vmatpush1.msra.mxu0 0.0
        %1413 = vmatprep.subr.mxu0 0.0
        %1414 = vmatpush1.msra.mxu0 0.0
        %1415 = vmatprep.subr.mxu0 0.0
        %1416 = vmatpush1.msra.mxu0 0.0
        %1417 = vmatprep.subr.mxu0 0.0
        %1418 = vmatpush1.msra.mxu0 0.0
        %1419 = vmatprep.subr.mxu0 0.0
        %1420 = vmatpush1.msra.mxu0 0.0
        %1421 = vmatprep.subr.mxu0 0.0
        %1422 = vmatpush1.msra.mxu0 0.0
        %1423 = vmatprep.subr.mxu0 0.0
        %1424 = vmatpush1.msra.mxu0 0.0
        %1425 = vmatprep.subr.mxu0 0.0
        %1426 = vmatpush1.msra.mxu0 0.0
        %1427 = vmatprep.subr.mxu0 0.0
        %1428 = vmatpush1.msra.mxu0 0.0
        %1429 = vmatprep.subr.mxu0 0.0
        %1430 = vmatpush1.msra.mxu0 0.0
        %1431 = vmatprep.subr.mxu0 0.0
        %1432 = vmatpush1.msra.mxu0 0.0
        %1433 = vmatprep.subr.mxu0 0.0
        %1434 = vmatpush1.msra.mxu0 0.0
        %1435 = vmatprep.subr.mxu0 0.0
        %1436 = vmatpush1.msra.mxu0 0.0
        %1437 = vmatprep.subr.mxu0 0.0
        %1438 = vmatpush1.msra.mxu0 0.0
        %1439 = vmatprep.subr.mxu0 0.0
        %1440 = vmatpush1.msra.mxu0 0.0
        %1441 = vmatprep.subr.mxu0 0.0
        %1442 = vmatpush1.msra.mxu0 0.0
        %1443 = vmatprep.subr.mxu0 0.0
        %1444 = vmatpush1.msra.mxu0 0.0
        %1445 = vmatprep.subr.mxu0 0.0
        %1446 = vmatpush1.msra.mxu0 0.0
        %1447 = vmatprep.subr.mxu0 0.0
        %1448 = vmatpush1.msra.mxu0 0.0
        %1449 = vmatprep.subr.mxu0 0.0
        %1450 = vmatpush1.msra.mxu0 0.0
        %1451 = vmatprep.subr.mxu0 0.0
        %1452 = vmatpush1.msra.mxu0 0.0
        %1453 = vmatprep.subr.mxu0 0.0
        %1454 = vmatpush1.msra.mxu0 0.0
        %1455 = vmatprep.subr.mxu0 0.0
        %1456 = vmatpush1.msra.mxu0 0.0
        %1457 = vmatprep.subr.mxu0 0.0
        %1458 = vmatpush1.msra.mxu0 0.0
        %1459 = vmatprep.subr.mxu0 0.0
        %1460 = vmatpush1.msra.mxu0 0.0
        %1461 = vmatprep.subr.mxu0 0.0
        %1462 = vmatpush1.msra.mxu0 0.0
        %1463 = vmatprep.subr.mxu0 0.0
        %1464 = vmatpush1.msra.mxu0 0.0
        %1465 = vmatprep.mubr.f32.mxu0 0.0
        %1466 = vmatmul.mubr.f32.gmra.mrb[0].mxu0 %v1396
        %v1467 = vpop.f32.mrb[0].mxu0
        %v1468 = vadd.f32 0.0, %v1467
        %v1469 = vpop.f32.mrb[0].mxu0
        %1470 = vmatprep.mubr.f32.mxu0 0.0
        %1471 = vmatmul.mubr.f32.gmra.mrb[0].mxu0 %v1399
        %v1472 = vpop.f32.mrb[0].mxu0
        %v1473 = vadd.f32 0.0, %v1472
        %v1474 = vpop.f32.mrb[0].mxu0
        %1475 = vdwg.mxu0
        %1478 = vrot.lane.b32.xlu0 %v1468, 48
        %v1479 = vpop.permute.xlu0 %1478
        %1480 = vrot.lane.b32.xlu0 %v1473, 48
        %v1481 = vpop.permute.xlu0 %1480
        %vm1484 = vcmask 523648
        %1485 = vst.msk [vmem:[#allocation5] sm:$0xff] %vm1484, %v1479
        %1486 = vst.msk [vmem:[#allocation5 + $0x8] sm:$0xff] %vm1484, %v1481
        %v1487 = vld [vmem:[#allocation5] sm:$0xff]
        %v1488 = vld [vmem:[#allocation5 + $0x8] sm:$0xff]
        %v1489 = vld [vmem:[#allocation15] sm:$0xff]
        %v1490 = vld [vmem:[#allocation15 + $0x8] sm:$0xff]
        %v1491 = vld [vmem:[#allocation15 + $0x10] sm:$0xff]
        %v1492 = vld [vmem:[#allocation15 + $0x18] sm:$0xff]
        %v1493 = vld [vmem:[#allocation15 + $0x20] sm:$0xff]
        %v1494 = vld [vmem:[#allocation15 + $0x28] sm:$0xff]
        %v1495 = vld [vmem:[#allocation15 + $0x30] sm:$0xff]
        %v1496 = vld [vmem:[#allocation15 + $0x38] sm:$0xff]
        %v1497 = vld [vmem:[%s6] sm:$0x1]
        %v1499 = vlaneseq
        %v1500 = vshrl.u32 %v1499, 7
        %v1501 = vsub.s32 0, %v1500
        %v1502 = vrot.slane %v1497, %v1501
        %v1505 = vsel %vm507, %v1487, 0
        %v1508 = vsel %vm507, %v1488, 0
        %1510 = vmatprep.subr.mxu0 0.0
        %1511 = vmatpush1.msra.mxu0 %v1489
        %1512 = vmatprep.subr.mxu0 0.0
        %1513 = vmatpush1.msra.mxu0 %v1490
        %1514 = vmatprep.subr.mxu0 0.0
        %1515 = vmatpush1.msra.mxu0 %v1491
        %1516 = vmatprep.subr.mxu0 0.0
        %1517 = vmatpush1.msra.mxu0 %v1492
        %1518 = vmatprep.subr.mxu0 0.0
        %1519 = vmatpush1.msra.mxu0 %v1493
        %1520 = vmatprep.subr.mxu0 0.0
        %1521 = vmatpush1.msra.mxu0 %v1494
        %1522 = vmatprep.subr.mxu0 0.0
        %1523 = vmatpush1.msra.mxu0 %v1495
        %1524 = vmatprep.subr.mxu0 0.0
        %1525 = vmatpush1.msra.mxu0 %v1496
        %1526 = vmatprep.subr.mxu0 0.0
        %1527 = vmatpush1.msra.mxu0 0.0
        %1528 = vmatprep.subr.mxu0 0.0
        %1529 = vmatpush1.msra.mxu0 0.0
        %1530 = vmatprep.subr.mxu0 0.0
        %1531 = vmatpush1.msra.mxu0 0.0
        %1532 = vmatprep.subr.mxu0 0.0
        %1533 = vmatpush1.msra.mxu0 0.0
        %1534 = vmatprep.subr.mxu0 0.0
        %1535 = vmatpush1.msra.mxu0 0.0
        %1536 = vmatprep.subr.mxu0 0.0
        %1537 = vmatpush1.msra.mxu0 0.0
        %1538 = vmatprep.subr.mxu0 0.0
        %1539 = vmatpush1.msra.mxu0 0.0
        %1540 = vmatprep.subr.mxu0 0.0
        %1541 = vmatpush1.msra.mxu0 0.0
        %1542 = vmatprep.subr.mxu0 0.0
        %1543 = vmatpush1.msra.mxu0 0.0
        %1544 = vmatprep.subr.mxu0 0.0
        %1545 = vmatpush1.msra.mxu0 0.0
        %1546 = vmatprep.subr.mxu0 0.0
        %1547 = vmatpush1.msra.mxu0 0.0
        %1548 = vmatprep.subr.mxu0 0.0
        %1549 = vmatpush1.msra.mxu0 0.0
        %1550 = vmatprep.subr.mxu0 0.0
        %1551 = vmatpush1.msra.mxu0 0.0
        %1552 = vmatprep.subr.mxu0 0.0
        %1553 = vmatpush1.msra.mxu0 0.0
        %1554 = vmatprep.subr.mxu0 0.0
        %1555 = vmatpush1.msra.mxu0 0.0
        %1556 = vmatprep.subr.mxu0 0.0
        %1557 = vmatpush1.msra.mxu0 0.0
        %1558 = vmatprep.subr.mxu0 0.0
        %1559 = vmatpush1.msra.mxu0 0.0
        %1560 = vmatprep.subr.mxu0 0.0
        %1561 = vmatpush1.msra.mxu0 0.0
        %1562 = vmatprep.subr.mxu0 0.0
        %1563 = vmatpush1.msra.mxu0 0.0
        %1564 = vmatprep.subr.mxu0 0.0
        %1565 = vmatpush1.msra.mxu0 0.0
        %1566 = vmatprep.subr.mxu0 0.0
        %1567 = vmatpush1.msra.mxu0 0.0
        %1568 = vmatprep.subr.mxu0 0.0
        %1569 = vmatpush1.msra.mxu0 0.0
        %1570 = vmatprep.subr.mxu0 0.0
        %1571 = vmatpush1.msra.mxu0 0.0
        %1572 = vmatprep.subr.mxu0 0.0
        %1573 = vmatpush1.msra.mxu0 0.0
        %1574 = vmatprep.mubr.f32.mxu0 0.0
        %1575 = vmatmul.mubr.f32.gmra.mrb[0].mxu0 %v1505
        %v1576 = vpop.f32.mrb[0].mxu0
        %v1577 = vadd.f32 %v1502, %v1576
        %v1578 = vpop.f32.mrb[0].mxu0
        %1579 = vmatprep.mubr.f32.mxu0 0.0
        %1580 = vmatmul.mubr.f32.gmra.mrb[0].mxu0 %v1508
        %v1581 = vpop.f32.mrb[0].mxu0
        %v1582 = vadd.f32 %v1502, %v1581
        %v1583 = vpop.f32.mrb[0].mxu0
        %1584 = vdwg.mxu0
        %1585 = vst [vmem:[%s409] sm:$0xff] %v1577
        %1586 = vst [vmem:[%s409 + $0x8] sm:$0xff] %v1582
        %s1587 = sand.u32 %s210, 1
        %s1588 = scalar_lea.sflag [#allocation8], %s1587
        %s1589 = sand.u32 %s210, 1
        %s1590 = smul.addr %s1589, 16
        %s1591 = scalar_lea.vmem [#allocation17], %s1590
        // Predicated region
        $region73: #{tpu_custom_call.1} parent=47 // pred_check
          %p1592 = pneg %p220
        $region74: #{tpu_custom_call.1} parent=47 // pred_check_branch
          %1594 = sbr.rel (%p1592) target = $region76
        $region75: #{tpu_custom_call.1} parent=47 // pred_region
          %s1595 = smul.u32 2, %s34
          %s1597 = ssub.s32 256, 256
          %1598 = vsyncadd %s1588, %s1597
          %s1599 = smul.addr %s33, 2
          %s1600 = sadd.s32 %s1595, %s1599
          %s1601 = smul.addr %s1600, 128
          %s1602 = scalar_lea.hbm %s7, %s1601
          %s1603 = sshll.u32 %s1591, 4
          %s1604 = int_to_ptr.vmem [resolvable:$true] %s1603
          %1609 = dma.vmem_to_hbm [thread:$0]  %s1604, 256, %s1602, %s1588, 128, 128, 8
        $region76: #{tpu_custom_call.1} parent=47 // pred_fallthru
          _
      $region48: #{tpu_custom_call.1} parent=5 // pred_fallthru
        _
      %p1610 = scmp.le.s32.totalorder 2, %s24
      // Predicated region
      $region77: #{tpu_custom_call.1} parent=5 // pred_check
        %p1611 = pneg %p1610
      $region78: #{tpu_custom_call.1} parent=5 // pred_check_branch
        %1613 = sbr.rel (%p1611) target = $region80
      $region79: #{tpu_custom_call.1} parent=5 // pred_region
        %s1614 = ssub.s32 %s24, 2
        // Predicated region
        $region81: #{tpu_custom_call.1} parent=79 // pred_check
          %p1615 = pneg %p226
        $region82: #{tpu_custom_call.1} parent=79 // pred_check_branch
          %1617 = sbr.rel (%p1615) target = $region84
        $region83: #{tpu_custom_call.1} parent=79 // pred_region
          %s1618 = sand.u32 %s211, 1
          %s1619 = scalar_lea.sflag [#allocation8], %s1618
          %s1620 = sand.u32 %s211, 1
          %s1621 = smul.addr %s1620, 16
          %s1622 = scalar_lea.vmem [#allocation17], %s1621
          %1623 = dma.done %s1619, 256
        $region84: #{tpu_custom_call.1} parent=79 // pred_fallthru
          _
      $region80: #{tpu_custom_call.1} parent=5 // pred_fallthru
        _
    $region6: #{tpu_custom_call.1} parent=1 // loop_footer
      %s28 = sadd.s32 1, %s24
    $region7: #{tpu_custom_call.1} parent=1 // loop_footer_branch
      %23 = sbr.rel target = $region3
    $region8: #{tpu_custom_call.1} parent=1 // loop_exit
      _
    %1624 = vsyncpa [#allocation7], 1
    %s1625 = scalar_lea.sflag [#allocation7], 1
    %1626 = vsyncpa %s1625, 1
    %1627 = vsyncpa [#allocation10], 1
    %s1628 = scalar_lea.sflag [#allocation10], 1
    %1629 = vsyncpa %s1628, 1
    %1630 = vsyncpa [#allocation13], 1
    %1631 = vsyncpa [#allocation16], 1
    %1632 = vsyncpa [#allocation8], 1
    %s1633 = scalar_lea.sflag [#allocation8], 1
    %1634 = vsyncpa %s1633, 1

</llo_original>
